<compile_context>
chip_gen: v6e
topology: v6e:2x2x1
jax: 0.10.0
libtpu: 0.0.40
codegen_flags: <defaults>
</compile_context>

<pallas_src>
import functools
import math

import jax
import jax.numpy as jnp
from jax.experimental import pallas as pl
from jax.experimental.pallas import tpu as pltpu


def _round_up(x, m):
    return (x + m - 1) // m * m


def _build_fused_weight(wq, bq, wk, bk, dexp_pad):
    """Fused, lane-replicated projection weight.

    Returns W of shape (nq*cq + nk*ck + 1, 2*dexp_pad) such that for
    x_aug = [q_flat | k_flat | 1]:
      (x_aug @ W)[:, (i*nk+j)*cm + m]            == r[b, i, m]
      (x_aug @ W)[:, dexp_pad + (i*nk+j)*cm + m] == w[b, j, m]
    """
    nq, cq, cm = wq.shape
    nk, ck, _ = wk.shape
    dexp = nq * nk * cm
    din = nq * cq + nk * ck + 1
    dtype = wq.dtype

    # wq[i] placed block-diagonally over i, replicated over all j.
    wq_bd = jnp.einsum("ix,iam->iaxm", jnp.eye(nq, dtype=dtype), wq)    # (nq,cq,nq,cm)
    wq_rep = jnp.broadcast_to(wq_bd[:, :, :, None, :],
                              (nq, cq, nq, nk, cm)).reshape(nq * cq, dexp)
    # wk[j] placed block-diagonally over j, replicated over all i.
    wk_bd = jnp.einsum("jx,jcm->jcxm", jnp.eye(nk, dtype=dtype), wk)    # (nk,ck,nk,cm)
    wk_rep = jnp.broadcast_to(wk_bd[:, :, None, :, :],
                              (nk, ck, nq, nk, cm)).reshape(nk * ck, dexp)
    # Biases, applied through the trailing ones-lane of the input.
    bq_rep = jnp.broadcast_to(bq[:, None, :], (nq, nk, cm)).reshape(dexp)
    bk_rep = jnp.broadcast_to(bk[None, :, :], (nq, nk, cm)).reshape(dexp)

    w_aug = jnp.zeros((din, 2 * dexp_pad), dtype)
    w_aug = w_aug.at[:nq * cq, :dexp].set(wq_rep)
    w_aug = w_aug.at[nq * cq:nq * cq + nk * ck,
                     dexp_pad:dexp_pad + dexp].set(wk_rep)
    w_aug = w_aug.at[din - 1, :dexp].set(bq_rep)
    w_aug = w_aug.at[din - 1, dexp_pad:dexp_pad + dexp].set(bk_rep)
    return w_aug


def _build_sum_matrix(nq, nk, cm, dexp_pad, out_lanes, dtype):
    """0/1 segment-sum matrix: S[(i*nk+j)*cm + m, i*nk + j] = 1."""
    dexp = nq * nk * cm
    rows = jnp.arange(dexp)
    s = jnp.zeros((dexp_pad, out_lanes), dtype)
    return s.at[rows, rows // cm].set(1.0)


def _select_attention_kernel(x_ref, w_ref, s_ref, a_ref, *, dexp_pad,
                             inv_temperature):
    # Block shapes (per grid step, TB batch rows):
    #   x_ref: (TB, din)            w_ref: (din, 2*dexp_pad)
    #   s_ref: (dexp_pad, 128)      a_ref: (TB, 128)
    #
    # Mosaic's default f32 matmul is full-precision here (verified against an
    # f32 HIGHEST-precision reference); pin precision=HIGHEST if tolerances
    # ever tighten or bf16 inputs are introduced.
    rw = jnp.dot(x_ref[...], w_ref[...],
                 preferred_element_type=jnp.float32)          # (TB, 2*dexp_pad)
    prod = rw[:, :dexp_pad] * rw[:, dexp_pad:]                # (TB, dexp_pad)
    a = jnp.dot(prod, s_ref[...],
                preferred_element_type=jnp.float32)           # (TB, 128)
    a_ref[...] = (a * inv_temperature).astype(a_ref.dtype)


def select_attention(q, k, wq, bq, wk, bk, *, tb=None):
    """Pallas implementation of SelectAttention.forward (share_q=share_k=False)."""
    B, nq, cq = q.shape
    _, nk, ck = k.shape
    cm = wq.shape[-1]
    inv_temperature = 1.0 / math.sqrt(cm)

    dexp = nq * nk * cm
    dexp_pad = _round_up(dexp, 128)           # lane-aligned (i,j,m) groups
    out_lanes = _round_up(nq * nk, 128)       # lane-dense output stores
    din = nq * cq + nk * ck + 1                # +1 ones-lane folds the biases

    # Batch tile: default to two balanced "parallel" steps (both v7x TCs),
    # capped for very large batches.  No wrapper-side padding: Pallas masks
    # the ragged final block and padded rows never feed a kept output row.
    if tb is None:
        tb = min(_round_up(pl.cdiv(B, 2), 8), 2048)
    tb = max(8, min(_round_up(tb, 8), _round_up(B, 8)))
    num_steps = pl.cdiv(B, tb)

    # Single lane-dense input operand [q | k | 1] (reshapes are free).
    x_aug = jnp.concatenate(
        [q.reshape(B, nq * cq), k.reshape(B, nk * ck),
         jnp.ones((B, 1), q.dtype)], axis=-1)                  # (B, din)

    w_aug = _build_fused_weight(wq, bq, wk, bk, dexp_pad)       # (din, 2*dexp_pad)
    s_mat = _build_sum_matrix(nq, nk, cm, dexp_pad, out_lanes, q.dtype)

    kernel = functools.partial(
        _select_attention_kernel,
        dexp_pad=dexp_pad, inv_temperature=inv_temperature)

    out_flat = pl.pallas_call(
        kernel,
        out_shape=jax.ShapeDtypeStruct((B, out_lanes), q.dtype),
        grid_spec=pltpu.PrefetchScalarGridSpec(
            num_scalar_prefetch=0,
            grid=(num_steps,),
            in_specs=[
                pl.BlockSpec((tb, din), lambda b: (b, 0)),              # x (tiled)
                pl.BlockSpec((din, 2 * dexp_pad), lambda b: (0, 0)),    # W (resident)
                pl.BlockSpec((dexp_pad, out_lanes), lambda b: (0, 0)),  # S (resident)
            ],
            out_specs=pl.BlockSpec((tb, out_lanes), lambda b: (b, 0)),
        ),
        compiler_params=pltpu.CompilerParams(
            dimension_semantics=("parallel",)),
    )(x_aug, w_aug, s_mat)

    return out_flat[:, :nq * nk].reshape(B, nq, nk)


def select_attention_ref(q, k, wq, bq, wk, bk):
    """Plain-JAX reference mirroring the PyTorch module exactly."""
    cm = wq.shape[-1]
    hi = jax.lax.Precision.HIGHEST
    r = jnp.einsum("bqc,qcm->bqm", q, wq, precision=hi) + bq[None]
    w = jnp.einsum("bkc,kcm->bkm", k, wk, precision=hi) + bk[None]
    return jnp.einsum("bqm,bkm->bqk", r, w, precision=hi) / math.sqrt(cm)


if __name__ == "__main__":
    # Shapes consistent with SelectAttention(cq=12, ck=10, cm=16, nq=5, nk=5).
    # B=600 exercises the no-pad ragged-final-block path with two balanced
    # "parallel" grid steps (tb=304 -> blocks of 304 + 296 rows).
    B, nq, nk = 600, 5, 5
    cq, ck, cm = 12, 10, 16

    key = jax.random.PRNGKey(0)
    kq, kk, kwq, kbq, kwk, kbk = jax.random.split(key, 6)

    # GLinear init: uniform(-a, a), a = 1/sqrt(cm)
    a_init = 1.0 / math.sqrt(cm)
    wq = jax.random.uniform(kwq, (nq, cq, cm), jnp.float32, -a_init, a_init)
    bq = jax.random.uniform(kbq, (nq, cm), jnp.float32, -a_init, a_init)
    wk = jax.random.uniform(kwk, (nk, ck, cm), jnp.float32, -a_init, a_init)
    bk = jax.random.uniform(kbk, (nk, cm), jnp.float32, -a_init, a_init)

    q = jax.random.normal(kq, (B, nq, cq), jnp.float32)
    k = jax.random.normal(kk, (B, nk, ck), jnp.float32)

    out = jax.block_until_ready(select_attention(q, k, wq, bq, wk, bk))
    ref = jax.block_until_ready(select_attention_ref(q, k, wq, bq, wk, bk))

    assert out.shape == (B, nq, nk)
    assert jnp.allclose(out, ref, atol=1e-4, rtol=1e-4), (
        float(jnp.max(jnp.abs(out - ref))))

    print("KERNEL_OK")
</pallas_src>

<mosaic_0001>
module attributes {stable_mosaic.version = 11 : i64} {
  func.func @_select_attention_kernel(%arg0: i32, %arg1: memref<304x111xf32, #tpu.memory_space<vmem>>, %arg2: memref<111x1024xf32, #tpu.memory_space<vmem>>, %arg3: memref<512x128xf32, #tpu.memory_space<vmem>>, %arg4: memref<304x128xf32, #tpu.memory_space<vmem>>) attributes {dimension_semantics = [#tpu.dimension_semantics<parallel>], iteration_bounds = array<i64: 2>, scalar_prefetch = 0 : i64, scratch_operands = 0 : i64, tpu.core_type = #tpu.core_type<tc>, window_params = [{transform_indices = @transform_0, window_bounds = array<i64: 304, 111>}, {pipeline_mode = #tpu.pipeline_mode<synchronous>, transform_indices = @transform_1, window_bounds = array<i64: 111, 1024>}, {pipeline_mode = #tpu.pipeline_mode<synchronous>, transform_indices = @transform_2, window_bounds = array<i64: 512, 128>}, {transform_indices = @transform_3, window_bounds = array<i64: 304, 128>}]} {
    %c0 = arith.constant 0 : index
    %c0_0 = arith.constant 0 : index
    %0 = vector.load %arg1[%c0, %c0_0] : memref<304x111xf32, #tpu.memory_space<vmem>>, vector<304x111xf32>
    %c0_1 = arith.constant 0 : index
    %c0_2 = arith.constant 0 : index
    %1 = vector.load %arg2[%c0_1, %c0_2] : memref<111x1024xf32, #tpu.memory_space<vmem>>, vector<111x1024xf32>
    %cst = arith.constant dense<0.000000e+00> : vector<304x1024xf32>
    %2 = tpu.matmul %0, %1, %cst {dimension_numbers = #tpu.dot_dimension_numbers<[1], [0], [0], [1], [0, 0, 1, 1], [], []>} : vector<304x111xf32>, vector<111x1024xf32>, vector<304x1024xf32> -> vector<304x1024xf32>
    %3 = vector.extract_strided_slice %2 {offsets = [0, 0], sizes = [304, 512], strides = [1, 1]} : vector<304x1024xf32> to vector<304x512xf32>
    %4 = vector.extract_strided_slice %2 {offsets = [0, 512], sizes = [304, 512], strides = [1, 1]} : vector<304x1024xf32> to vector<304x512xf32>
    %5 = arith.mulf %3, %4 : vector<304x512xf32>
    %c0_3 = arith.constant 0 : index
    %c0_4 = arith.constant 0 : index
    %6 = vector.load %arg3[%c0_3, %c0_4] : memref<512x128xf32, #tpu.memory_space<vmem>>, vector<512x128xf32>
    %cst_5 = arith.constant dense<0.000000e+00> : vector<304x128xf32>
    %7 = tpu.matmul %5, %6, %cst_5 {dimension_numbers = #tpu.dot_dimension_numbers<[1], [0], [0], [1], [0, 0, 1, 1], [], []>} : vector<304x512xf32>, vector<512x128xf32>, vector<304x128xf32> -> vector<304x128xf32>
    %cst_6 = arith.constant 2.500000e-01 : f32
    %8 = vector.broadcast %cst_6 : f32 to vector<304x128xf32>
    %9 = arith.mulf %7, %8 : vector<304x128xf32>
    %c0_7 = arith.constant 0 : index
    %c0_8 = arith.constant 0 : index
    %10 = vector.load %arg4[%c0_7, %c0_8] : memref<304x128xf32, #tpu.memory_space<vmem>>, vector<304x128xf32>
    tpu.vector_store %arg4[%c0_7, %c0_8], %9 {strides = array<i32>} : memref<304x128xf32, #tpu.memory_space<vmem>>, vector<304x128xf32>,
    return
  }
  func.func @transform_0(%arg0: i32) -> (i32, i32) {
    %c0_i32 = arith.constant 0 : i32
    %c0_i32_0 = arith.constant 0 : i32
    return %arg0, %c0_i32 : i32, i32
  }
  func.func @transform_1(%arg0: i32) -> (i32, i32) {
    %c0_i32 = arith.constant 0 : i32
    %c0_i32_0 = arith.constant 0 : i32
    %c0_i32_1 = arith.constant 0 : i32
    return %c0_i32, %c0_i32_0 : i32, i32
  }
  func.func @transform_2(%arg0: i32) -> (i32, i32) {
    %c0_i32 = arith.constant 0 : i32
    %c0_i32_0 = arith.constant 0 : i32
    %c0_i32_1 = arith.constant 0 : i32
    return %c0_i32, %c0_i32_0 : i32, i32
  }
  func.func @transform_3(%arg0: i32) -> (i32, i32) {
    %c0_i32 = arith.constant 0 : i32
    %c0_i32_0 = arith.constant 0 : i32
    return %arg0, %c0_i32 : i32, i32
  }
}

</mosaic_0001>

<llo_original>
// kernel: tpu_custom_call.1
$region0: #{tpu_custom_call.1}
  #allocation0 [shape = 'u32[]', space=smem, size = 0x4, offset = 0x4, fixed_abs, tag = 'smem constant byte address 0x4 - core index']
  #allocation1 [shape = 'u32[144,128]{1,0:T(1,128)}', space=vmem, size = 0x12000, scoped, tag = 'internal scratch']
  %s0 = inlined_call_operand.vmem [shape: f32[600,111], index: 0, kind: input, shape index: {}]
  %s1 = inlined_call_operand.vmem [shape: f32[111,1024], index: 1, kind: input, shape index: {}]
  %s2 = inlined_call_operand.hbm [shape: f32[512,128], index: 2, kind: input, shape index: {}]
  %s3 = inlined_call_operand.hbm [shape: f32[600,128], index: 3, kind: output, shape index: {}]
  %s4 = sld [smem:[#allocation0]]
  $region49: #{tpu_custom_call.1} parent=0
    _
  %s6 = ssub.s32 1, %s4
  %s7 = scalar_select 0, %s6, %s4
  $region1: #{tpu_custom_call.1} parent=0
    #allocation2 [shape = 'u8[262144]{0}', space=vmem, size = 0x40000, scoped, tag = 'input window, operand 2, single buffered']
    #allocation3 [shape = 's32[2]{0}', space=sflag, size = 0x8, scoped, tag = 'scoped memory for tpu_custom_call.1']
    #allocation4 [shape = 's32[2]{0}', space=sflag, size = 0x8, scoped, tag = 'scoped memory for tpu_custom_call.1']
    #allocation5 [shape = 'u8[311296]{0}', space=vmem, size = 0x4c000, scoped, tag = 'output window, operand 0']
    %8 = vsyncpa [#allocation3], 0
    %9 = vsyncpa [#allocation4], 0
    %s10 = scalar_lea.sflag [#allocation4], 1
    %11 = vsyncpa %s10, 0
    loop: start=0, step=1, limit=4
    $region2: #{tpu_custom_call.1} parent=1 // loop_pre_header
      _
    $region3: #{tpu_custom_call.1} parent=1 // loop_header
      %s13 = sphi 0, %s17
      %p14 = scmp.ge.s32.totalorder %s13, 4
      %s23 = sphi 0, %s25
      %s26 = sphi 0, %s23
      %s27 = sphi 0, %s26
      %s43 = sphi 0, %s27
      %s47 = sphi 0, %s47
      %s49 = sphi 0, %s47
      %s50 = sphi 0, %s49
      %s64 = sphi 0, %s50
      %s68 = sphi 0, %s68
      %s70 = sphi 0, %s68
      %s71 = sphi 0, %s70
      %s85 = sphi 0, %s71
      %s91 = sphi 0, %s93
      %s94 = sphi 0, %s91
      %s95 = sphi 0, %s94
      %s111 = sphi 0, %s95
    $region4: #{tpu_custom_call.1} parent=1 // loop_header_branch
      %16 = sbr.rel (%p14) target = $region8
    $region5: #{tpu_custom_call.1} parent=1 // loop_body
      %s18 = ssub.s32 %s13, 1
      %s19 = ssub.s32 %s13, 2
      %s20 = sadd.s32 %s13, 1
      %s21 = ssub.s32 %s13, %s20
      %p22 = scmp.eq.s32.totalorder %s21, 0
      %s24 = sadd.s32 %s23, 1
      %s25 = scalar_select %p22, %s23, %s24
      %p28 = pneg %p22
      %p29 = scmp.eq.s32.totalorder %s13, 1
      %p30 = por %p28, %p29
      %p31 = scmp.ne.s32.totalorder %s23, %s26
      %p32 = scmp.eq.s32.totalorder %s13, 0
      %p33 = por %p31, %p32
      %p34 = scmp.ne.s32.totalorder %s23, %s26
      %p35 = scmp.eq.s32.totalorder %s18, 1
      %p36 = por %p34, %p35
      %p37 = scmp.ne.s32.totalorder %s26, %s27
      %p38 = scmp.eq.s32.totalorder %s18, 0
      %p39 = por %p37, %p38
      %p40 = scmp.ne.s32.totalorder %s26, %s27
      %p41 = scmp.eq.s32.totalorder %s19, 1
      %p42 = por %p40, %p41
      %p44 = scmp.ne.s32.totalorder %s27, %s43
      %p45 = scmp.eq.s32.totalorder %s19, 0
      %p46 = por %p44, %p45
      %s48 = sadd.s32 %s47, 1
      %p51 = scmp.eq.s32.totalorder %s13, 1
      %p52 = scmp.ne.s32.totalorder %s47, %s49
      %p53 = scmp.eq.s32.totalorder %s13, 0
      %p54 = por %p52, %p53
      %p55 = scmp.ne.s32.totalorder %s47, %s49
      %p56 = scmp.eq.s32.totalorder %s18, 1
      %p57 = por %p55, %p56
      %p58 = scmp.ne.s32.totalorder %s49, %s50
      %p59 = scmp.eq.s32.totalorder %s18, 0
      %p60 = por %p58, %p59
      %p61 = scmp.ne.s32.totalorder %s49, %s50
      %p62 = scmp.eq.s32.totalorder %s19, 1
      %p63 = por %p61, %p62
      %p65 = scmp.ne.s32.totalorder %s50, %s64
      %p66 = scmp.eq.s32.totalorder %s19, 0
      %p67 = por %p65, %p66
      %s69 = sadd.s32 %s68, 1
      %p72 = scmp.eq.s32.totalorder %s13, 1
      %p73 = scmp.ne.s32.totalorder %s68, %s70
      %p74 = scmp.eq.s32.totalorder %s13, 0
      %p75 = por %p73, %p74
      %p76 = scmp.ne.s32.totalorder %s68, %s70
      %p77 = scmp.eq.s32.totalorder %s18, 1
      %p78 = por %p76, %p77
      %p79 = scmp.ne.s32.totalorder %s70, %s71
      %p80 = scmp.eq.s32.totalorder %s18, 0
      %p81 = por %p79, %p80
      %p82 = scmp.ne.s32.totalorder %s70, %s71
      %p83 = scmp.eq.s32.totalorder %s19, 1
      %p84 = por %p82, %p83
      %p86 = scmp.ne.s32.totalorder %s71, %s85
      %p87 = scmp.eq.s32.totalorder %s19, 0
      %p88 = por %p86, %p87
      %s89 = ssub.s32 %s13, %s20
      %p90 = scmp.eq.s32.totalorder %s89, 0
      %s92 = sadd.s32 %s91, 1
      %s93 = scalar_select %p90, %s91, %s92
      %p96 = pneg %p90
      %p97 = scmp.eq.s32.totalorder %s13, 1
      %p98 = por %p96, %p97
      %p99 = scmp.ne.s32.totalorder %s91, %s94
      %p100 = scmp.eq.s32.totalorder %s13, 0
      %p101 = por %p99, %p100
      %p102 = scmp.ne.s32.totalorder %s91, %s94
      %p103 = scmp.eq.s32.totalorder %s18, 1
      %p104 = por %p102, %p103
      %p105 = scmp.ne.s32.totalorder %s94, %s95
      %p106 = scmp.eq.s32.totalorder %s18, 0
      %p107 = por %p105, %p106
      %p108 = scmp.ne.s32.totalorder %s94, %s95
      %p109 = scmp.eq.s32.totalorder %s19, 1
      %p110 = por %p108, %p109
      %p112 = scmp.ne.s32.totalorder %s95, %s111
      %p113 = scmp.eq.s32.totalorder %s19, 0
      %p114 = por %p112, %p113
      %p115 = scmp.le.s32.totalorder 1, %s13
      %p116 = scmp.lt.s32.totalorder %s13, 3
      %p117 = pnand %p115, %p116
      %p118 = pneg %p117
      // Predicated region
      $region9: #{tpu_custom_call.1} parent=5 // pred_check
        _
      $region10: #{tpu_custom_call.1} parent=5 // pred_check_branch
        %120 = sbr.rel (%p117) target = $region12
      $region11: #{tpu_custom_call.1} parent=5 // pred_region
        %s121 = ssub.s32 %s13, 1
        // Predicated region
        $region13: #{tpu_custom_call.1} parent=11 // pred_check
          %p122 = pneg %p60
        $region14: #{tpu_custom_call.1} parent=11 // pred_check_branch
          %124 = sbr.rel (%p122) target = $region16
        $region15: #{tpu_custom_call.1} parent=11 // pred_region
          _
        $region16: #{tpu_custom_call.1} parent=11 // pred_fallthru
          _
        // Predicated region
        $region17: #{tpu_custom_call.1} parent=11 // pred_check
          %p125 = pneg %p81
        $region18: #{tpu_custom_call.1} parent=11 // pred_check_branch
          %127 = sbr.rel (%p125) target = $region20
        $region19: #{tpu_custom_call.1} parent=11 // pred_region
          %s129 = ssub.s32 8192, 8192
          %130 = vsyncadd [#allocation3], %s129
          %s131 = sshll.u32 [#allocation2], 4
          %s132 = int_to_ptr.vmem [resolvable:$true] %s131
          %137 = dma.hbm_to_vmem [thread:$0]  %s2, 8192, %s132, [#allocation3], 128, 128, 8
        $region20: #{tpu_custom_call.1} parent=11 // pred_fallthru
          _
      $region12: #{tpu_custom_call.1} parent=5 // pred_fallthru
        _
      %p138 = scmp.lt.s32.totalorder %s13, 2
      // Predicated region
      $region21: #{tpu_custom_call.1} parent=5 // pred_check
        %p139 = pneg %p138
      $region22: #{tpu_custom_call.1} parent=5 // pred_check_branch
        %141 = sbr.rel (%p139) target = $region24
      $region23: #{tpu_custom_call.1} parent=5 // pred_region
        // Predicated region
        $region25: #{tpu_custom_call.1} parent=23 // pred_check
          %p142 = pneg %p33
        $region26: #{tpu_custom_call.1} parent=23 // pred_check_branch
          %144 = sbr.rel (%p142) target = $region28
        $region27: #{tpu_custom_call.1} parent=23 // pred_region
          %s145 = smul.u32 38, %s13
          %s146 = ssub.s32 75, %s145
          %p147 = scmp.lt.s32.totalorder %s146, 38
          %s148 = scalar_select %p147, %s146, 38
          %s149 = smul.u32 128, %s148
          %p150 = scmp.lt.s32.totalorder %s145, 74
          %s151 = scalar_select %p150, %s145, 74
          %s152 = smul.addr %s151, 8
          %s153 = scalar_lea.vmem %s0, %s152
          %s154 = smul.u32 38, %s13
          %s155 = ssub.s32 75, %s154
          %p156 = scmp.lt.s32.totalorder %s155, 38
          %s157 = scalar_select %p156, %s155, 38
          %s158 = smul.u32 128, %s157
        $region28: #{tpu_custom_call.1} parent=23 // pred_fallthru
          _
      $region24: #{tpu_custom_call.1} parent=5 // pred_fallthru
        _
      %p159 = scmp.le.s32.totalorder 1, %s13
      %p160 = scmp.lt.s32.totalorder %s13, 3
      %p161 = pnand %p159, %p160
      %p162 = pneg %p161
      // Predicated region
      $region29: #{tpu_custom_call.1} parent=5 // pred_check
        _
      $region30: #{tpu_custom_call.1} parent=5 // pred_check_branch
        %164 = sbr.rel (%p161) target = $region32
      $region31: #{tpu_custom_call.1} parent=5 // pred_region
        %s165 = ssub.s32 %s13, 1
        // Predicated region
        $region33: #{tpu_custom_call.1} parent=31 // pred_check
          %p166 = pneg %p81
        $region34: #{tpu_custom_call.1} parent=31 // pred_check_branch
          %168 = sbr.rel (%p166) target = $region36
        $region35: #{tpu_custom_call.1} parent=31 // pred_region
          %169 = dma.done [#allocation3], 8192
        $region36: #{tpu_custom_call.1} parent=31 // pred_fallthru
          _
        %s170 = smul.u32 38, %s18
        %s171 = ssub.s32 75, %s170
        %p172 = scmp.lt.s32.totalorder %s171, 38
        %s173 = scalar_select %p172, %s171, 38
        %s174 = smul.u32 128, %s173
        %p175 = scmp.lt.s32.totalorder %s170, 74
        %s176 = scalar_select %p175, %s170, 74
        %s177 = smul.addr %s176, 8
        %s178 = scalar_lea.vmem %s0, %s177
        %p179 = pneg %p39
        %p180 = pneg %p36
        %p181 = pneg %p60
        %p182 = pneg %p57
        %p183 = pneg %p81
        %p184 = pneg %p78
        %p185 = pneg %p107
        %p186 = pneg %p104
        %s187 = sand.u32 %s94, 1
        %s188 = scalar_lea.sflag [#allocation4], %s187
        %s189 = sand.u32 %s94, 1
        %s190 = smul.addr %s189, 304
        %s191 = scalar_lea.vmem [#allocation5], %s190
        %s192 = smul.u32 38, %s18
        %s193 = ssub.s32 75, %s192
        %p194 = scmp.lt.s32.totalorder %s193, 38
        %s195 = scalar_select %p194, %s193, 38
        %s196 = smul.u32 128, %s195
        %p197 = scmp.lt.s32.totalorder %s192, 74
        %s198 = scalar_select %p197, %s192, 74
        %s199 = smul.addr %s198, 8
        %s200 = scalar_lea.vmem %s0, %s199
        %s201 = smul.u32 38, %s18
        %s202 = ssub.s32 75, %s201
        %p203 = scmp.lt.s32.totalorder %s202, 38
        %s204 = scalar_select %p203, %s202, 38
        %s205 = smul.u32 128, %s204
        %s206 = smul.u32 38, %s18
        %s207 = ssub.s32 75, %s206
        %p208 = scmp.lt.s32.totalorder %s207, 38
        %s209 = scalar_select %p208, %s207, 38
        %s210 = smul.u32 128, %s209
        %v211 = vld [vmem:[%s200] sm:$0xff]
        %v212 = vld [vmem:[%s200 + $0x8] sm:$0xff]
        %v213 = vld [vmem:[%s200 + $0x10] sm:$0xff]
        %v214 = vld [vmem:[%s200 + $0x18] sm:$0xff]
        %v215 = vld [vmem:[%s200 + $0x20] sm:$0xff]
        %v216 = vld [vmem:[%s200 + $0x28] sm:$0xff]
        %v217 = vld [vmem:[%s200 + $0x30] sm:$0xff]
        %v218 = vld [vmem:[%s200 + $0x38] sm:$0xff]
        %v219 = vld [vmem:[%s200 + $0x40] sm:$0xff]
        %v220 = vld [vmem:[%s200 + $0x48] sm:$0xff]
        %v221 = vld [vmem:[%s200 + $0x50] sm:$0xff]
        %v222 = vld [vmem:[%s200 + $0x58] sm:$0xff]
        %v223 = vld [vmem:[%s200 + $0x60] sm:$0xff]
        %v224 = vld [vmem:[%s200 + $0x68] sm:$0xff]
        %v225 = vld [vmem:[%s200 + $0x70] sm:$0xff]
        %v226 = vld [vmem:[%s200 + $0x78] sm:$0xff]
        %v227 = vld [vmem:[%s200 + $0x80] sm:$0xff]
        %v228 = vld [vmem:[%s200 + $0x88] sm:$0xff]
        %v229 = vld [vmem:[%s200 + $0x90] sm:$0xff]
        %v230 = vld [vmem:[%s200 + $0x98] sm:$0xff]
        %v231 = vld [vmem:[%s200 + $0xa0] sm:$0xff]
        %v232 = vld [vmem:[%s200 + $0xa8] sm:$0xff]
        %v233 = vld [vmem:[%s200 + $0xb0] sm:$0xff]
        %v234 = vld [vmem:[%s200 + $0xb8] sm:$0xff]
        %v235 = vld [vmem:[%s200 + $0xc0] sm:$0xff]
        %v236 = vld [vmem:[%s200 + $0xc8] sm:$0xff]
        %v237 = vld [vmem:[%s200 + $0xd0] sm:$0xff]
        %v238 = vld [vmem:[%s200 + $0xd8] sm:$0xff]
        %v239 = vld [vmem:[%s200 + $0xe0] sm:$0xff]
        %v240 = vld [vmem:[%s200 + $0xe8] sm:$0xff]
        %v241 = vld [vmem:[%s200 + $0xf0] sm:$0xff]
        %v242 = vld [vmem:[%s200 + $0xf8] sm:$0xff]
        %v243 = vld [vmem:[%s200 + $0x100] sm:$0xff]
        %v244 = vld [vmem:[%s200 + $0x108] sm:$0xff]
        %v245 = vld [vmem:[%s200 + $0x110] sm:$0xff]
        %v246 = vld [vmem:[%s200 + $0x118] sm:$0xff]
        %v247 = vld [vmem:[%s200 + $0x120] sm:$0xff]
        %v248 = vld [vmem:[%s200 + $0x128] sm:$0xff]
        %v249 = vld [vmem:[%s1] sm:$0xff]
        %v250 = vld [vmem:[%s1 + $0x8] sm:$0xff]
        %v251 = vld [vmem:[%s1 + $0x10] sm:$0xff]
        %v252 = vld [vmem:[%s1 + $0x18] sm:$0xff]
        %v253 = vld [vmem:[%s1 + $0x20] sm:$0xff]
        %v254 = vld [vmem:[%s1 + $0x28] sm:$0xff]
        %v255 = vld [vmem:[%s1 + $0x30] sm:$0xff]
        %v256 = vld [vmem:[%s1 + $0x38] sm:$0xff]
        %v257 = vld [vmem:[%s1 + $0x40] sm:$0xff]
        %v258 = vld [vmem:[%s1 + $0x48] sm:$0xff]
        %v259 = vld [vmem:[%s1 + $0x50] sm:$0xff]
        %v260 = vld [vmem:[%s1 + $0x58] sm:$0xff]
        %v261 = vld [vmem:[%s1 + $0x60] sm:$0xff]
        %v262 = vld [vmem:[%s1 + $0x68] sm:$0xff]
        %v263 = vld [vmem:[%s1 + $0x70] sm:$0xff]
        %v264 = vld [vmem:[%s1 + $0x78] sm:$0xff]
        %v265 = vld [vmem:[%s1 + $0x80] sm:$0xff]
        %v266 = vld [vmem:[%s1 + $0x88] sm:$0xff]
        %v267 = vld [vmem:[%s1 + $0x90] sm:$0xff]
        %v268 = vld [vmem:[%s1 + $0x98] sm:$0xff]
        %v269 = vld [vmem:[%s1 + $0xa0] sm:$0xff]
        %v270 = vld [vmem:[%s1 + $0xa8] sm:$0xff]
        %v271 = vld [vmem:[%s1 + $0xb0] sm:$0xff]
        %v272 = vld [vmem:[%s1 + $0xb8] sm:$0xff]
        %v273 = vld [vmem:[%s1 + $0xc0] sm:$0xff]
        %v274 = vld [vmem:[%s1 + $0xc8] sm:$0xff]
        %v275 = vld [vmem:[%s1 + $0xd0] sm:$0xff]
        %v276 = vld [vmem:[%s1 + $0xd8] sm:$0xff]
        %v277 = vld [vmem:[%s1 + $0xe0] sm:$0xff]
        %v278 = vld [vmem:[%s1 + $0xe8] sm:$0xff]
        %v279 = vld [vmem:[%s1 + $0xf0] sm:$0xff]
        %v280 = vld [vmem:[%s1 + $0xf8] sm:$0xff]
        %v281 = vld [vmem:[%s1 + $0x100] sm:$0xff]
        %v282 = vld [vmem:[%s1 + $0x108] sm:$0xff]
        %v283 = vld [vmem:[%s1 + $0x110] sm:$0xff]
        %v284 = vld [vmem:[%s1 + $0x118] sm:$0xff]
        %v285 = vld [vmem:[%s1 + $0x120] sm:$0xff]
        %v286 = vld [vmem:[%s1 + $0x128] sm:$0xff]
        %v287 = vld [vmem:[%s1 + $0x130] sm:$0xff]
        %v288 = vld [vmem:[%s1 + $0x138] sm:$0xff]
        %v289 = vld [vmem:[%s1 + $0x140] sm:$0xff]
        %v290 = vld [vmem:[%s1 + $0x148] sm:$0xff]
        %v291 = vld [vmem:[%s1 + $0x150] sm:$0xff]
        %v292 = vld [vmem:[%s1 + $0x158] sm:$0xff]
        %v293 = vld [vmem:[%s1 + $0x160] sm:$0xff]
        %v294 = vld [vmem:[%s1 + $0x168] sm:$0xff]
        %v295 = vld [vmem:[%s1 + $0x170] sm:$0xff]
        %v296 = vld [vmem:[%s1 + $0x178] sm:$0xff]
        %v297 = vld [vmem:[%s1 + $0x180] sm:$0xff]
        %v298 = vld [vmem:[%s1 + $0x188] sm:$0xff]
        %v299 = vld [vmem:[%s1 + $0x190] sm:$0xff]
        %v300 = vld [vmem:[%s1 + $0x198] sm:$0xff]
        %v301 = vld [vmem:[%s1 + $0x1a0] sm:$0xff]
        %v302 = vld [vmem:[%s1 + $0x1a8] sm:$0xff]
        %v303 = vld [vmem:[%s1 + $0x1b0] sm:$0xff]
        %v304 = vld [vmem:[%s1 + $0x1b8] sm:$0xff]
        %v305 = vld [vmem:[%s1 + $0x1c0] sm:$0xff]
        %v306 = vld [vmem:[%s1 + $0x1c8] sm:$0xff]
        %v307 = vld [vmem:[%s1 + $0x1d0] sm:$0xff]
        %v308 = vld [vmem:[%s1 + $0x1d8] sm:$0xff]
        %v309 = vld [vmem:[%s1 + $0x1e0] sm:$0xff]
        %v310 = vld [vmem:[%s1 + $0x1e8] sm:$0xff]
        %v311 = vld [vmem:[%s1 + $0x1f0] sm:$0xff]
        %v312 = vld [vmem:[%s1 + $0x1f8] sm:$0xff]
        %v313 = vld [vmem:[%s1 + $0x200] sm:$0xff]
        %v314 = vld [vmem:[%s1 + $0x208] sm:$0xff]
        %v315 = vld [vmem:[%s1 + $0x210] sm:$0xff]
        %v316 = vld [vmem:[%s1 + $0x218] sm:$0xff]
        %v317 = vld [vmem:[%s1 + $0x220] sm:$0xff]
        %v318 = vld [vmem:[%s1 + $0x228] sm:$0xff]
        %v319 = vld [vmem:[%s1 + $0x230] sm:$0xff]
        %v320 = vld [vmem:[%s1 + $0x238] sm:$0xff]
        %v321 = vld [vmem:[%s1 + $0x240] sm:$0xff]
        %v322 = vld [vmem:[%s1 + $0x248] sm:$0xff]
        %v323 = vld [vmem:[%s1 + $0x250] sm:$0xff]
        %v324 = vld [vmem:[%s1 + $0x258] sm:$0xff]
        %v325 = vld [vmem:[%s1 + $0x260] sm:$0xff]
        %v326 = vld [vmem:[%s1 + $0x268] sm:$0xff]
        %v327 = vld [vmem:[%s1 + $0x270] sm:$0xff]
        %v328 = vld [vmem:[%s1 + $0x278] sm:$0xff]
        %v329 = vld [vmem:[%s1 + $0x280] sm:$0xff]
        %v330 = vld [vmem:[%s1 + $0x288] sm:$0xff]
        %v331 = vld [vmem:[%s1 + $0x290] sm:$0xff]
        %v332 = vld [vmem:[%s1 + $0x298] sm:$0xff]
        %v333 = vld [vmem:[%s1 + $0x2a0] sm:$0xff]
        %v334 = vld [vmem:[%s1 + $0x2a8] sm:$0xff]
        %v335 = vld [vmem:[%s1 + $0x2b0] sm:$0xff]
        %v336 = vld [vmem:[%s1 + $0x2b8] sm:$0xff]
        %v337 = vld [vmem:[%s1 + $0x2c0] sm:$0xff]
        %v338 = vld [vmem:[%s1 + $0x2c8] sm:$0xff]
        %v339 = vld [vmem:[%s1 + $0x2d0] sm:$0xff]
        %v340 = vld [vmem:[%s1 + $0x2d8] sm:$0xff]
        %v341 = vld [vmem:[%s1 + $0x2e0] sm:$0xff]
        %v342 = vld [vmem:[%s1 + $0x2e8] sm:$0xff]
        %v343 = vld [vmem:[%s1 + $0x2f0] sm:$0xff]
        %v344 = vld [vmem:[%s1 + $0x2f8] sm:$0xff]
        %v345 = vld [vmem:[%s1 + $0x300] sm:$0xff]
        %v346 = vld [vmem:[%s1 + $0x308] sm:$0xff]
        %v347 = vld [vmem:[%s1 + $0x310] sm:$0xff]
        %v348 = vld [vmem:[%s1 + $0x318] sm:$0xff]
        %v349 = vld [vmem:[%s1 + $0x320] sm:$0xff]
        %v350 = vld [vmem:[%s1 + $0x328] sm:$0xff]
        %v351 = vld [vmem:[%s1 + $0x330] sm:$0xff]
        %v352 = vld [vmem:[%s1 + $0x338] sm:$0xff]
        %v353 = vld [vmem:[%s1 + $0x340] sm:$0x7f]
        %v354 = vld [vmem:[%s1 + $0x348] sm:$0x7f]
        %v355 = vld [vmem:[%s1 + $0x350] sm:$0x7f]
        %v356 = vld [vmem:[%s1 + $0x358] sm:$0x7f]
        %v357 = vld [vmem:[%s1 + $0x360] sm:$0x7f]
        %v358 = vld [vmem:[%s1 + $0x368] sm:$0x7f]
        %v359 = vld [vmem:[%s1 + $0x370] sm:$0x7f]
        %v360 = vld [vmem:[%s1 + $0x378] sm:$0x7f]
        %vm361 = vcmask 908288
        %v363 = vsel %vm361, %v211, 0
        %v366 = vsel %vm361, %v212, 0
        %v369 = vsel %vm361, %v213, 0
        %v372 = vsel %vm361, %v214, 0
        %v375 = vsel %vm361, %v215, 0
        %v378 = vsel %vm361, %v216, 0
        %v381 = vsel %vm361, %v217, 0
        %v384 = vsel %vm361, %v218, 0
        %v387 = vsel %vm361, %v219, 0
        %v390 = vsel %vm361, %v220, 0
        %v393 = vsel %vm361, %v221, 0
        %v396 = vsel %vm361, %v222, 0
        %v399 = vsel %vm361, %v223, 0
        %v402 = vsel %vm361, %v224, 0
        %v405 = vsel %vm361, %v225, 0
        %v408 = vsel %vm361, %v226, 0
        %v411 = vsel %vm361, %v227, 0
        %v414 = vsel %vm361, %v228, 0
        %v417 = vsel %vm361, %v229, 0
        %v420 = vsel %vm361, %v230, 0
        %v423 = vsel %vm361, %v231, 0
        %v426 = vsel %vm361, %v232, 0
        %v429 = vsel %vm361, %v233, 0
        %v432 = vsel %vm361, %v234, 0
        %v435 = vsel %vm361, %v235, 0
        %v438 = vsel %vm361, %v236, 0
        %v441 = vsel %vm361, %v237, 0
        %v444 = vsel %vm361, %v238, 0
        %v447 = vsel %vm361, %v239, 0
        %v450 = vsel %vm361, %v240, 0
        %v453 = vsel %vm361, %v241, 0
        %v456 = vsel %vm361, %v242, 0
        %v459 = vsel %vm361, %v243, 0
        %v462 = vsel %vm361, %v244, 0
        %v465 = vsel %vm361, %v245, 0
        %v468 = vsel %vm361, %v246, 0
        %v471 = vsel %vm361, %v247, 0
        %v474 = vsel %vm361, %v248, 0
        %vm476 = vcmask 1046528
        %v478 = vsel %vm476, %v353, 0
        %v481 = vsel %vm476, %v354, 0
        %v484 = vsel %vm476, %v355, 0
        %v487 = vsel %vm476, %v356, 0
        %v490 = vsel %vm476, %v357, 0
        %v493 = vsel %vm476, %v358, 0
        %v496 = vsel %vm476, %v359, 0
        %v499 = vsel %vm476, %v360, 0
        %501 = vmatprep.subr.mxu0 0.0
        %502 = vmatpush1.msra.mxu0 0.0
        %503 = vmatprep.subr.mxu0 0.0
        %504 = vmatpush1.msra.mxu0 0.0
        %505 = vmatprep.subr.mxu0 %v481
        %506 = vmatpush1.msra.mxu0 %v478
        %507 = vmatprep.subr.mxu0 %v346
        %508 = vmatpush1.msra.mxu0 %v345
        %509 = vmatprep.subr.mxu0 %v338
        %510 = vmatpush1.msra.mxu0 %v337
        %511 = vmatprep.subr.mxu0 %v330
        %512 = vmatpush1.msra.mxu0 %v329
        %513 = vmatprep.subr.mxu0 %v322
        %514 = vmatpush1.msra.mxu0 %v321
        %515 = vmatprep.subr.mxu0 %v314
        %516 = vmatpush1.msra.mxu0 %v313
        %517 = vmatprep.subr.mxu0 %v306
        %518 = vmatpush1.msra.mxu0 %v305
        %519 = vmatprep.subr.mxu0 %v298
        %520 = vmatpush1.msra.mxu0 %v297
        %521 = vmatprep.subr.mxu0 %v290
        %522 = vmatpush1.msra.mxu0 %v289
        %523 = vmatprep.subr.mxu0 %v282
        %524 = vmatpush1.msra.mxu0 %v281
        %525 = vmatprep.subr.mxu0 %v274
        %526 = vmatpush1.msra.mxu0 %v273
        %527 = vmatprep.subr.mxu0 %v266
        %528 = vmatpush1.msra.mxu0 %v265
        %529 = vmatprep.subr.mxu0 %v258
        %530 = vmatpush1.msra.mxu0 %v257
        %531 = vmatprep.subr.mxu0 %v250
        %532 = vmatpush1.msra.mxu0 %v249
        %533 = vmatprep.subr.mxu0 0.0
        %534 = vmatpush2.msra.mxu0 0.0
        %535 = vmatprep.subr.mxu0 0.0
        %536 = vmatpush2.msra.mxu0 0.0
        %537 = vmatprep.subr.mxu0 0.0
        %538 = vmatpush2.msra.mxu0 0.0
        %539 = vmatprep.subr.mxu0 0.0
        %540 = vmatpush2.msra.mxu0 0.0
        %541 = vmatprep.subr.mxu0 0.0
        %542 = vmatpush2.msra.mxu0 0.0
        %543 = vmatprep.subr.mxu0 0.0
        %544 = vmatpush2.msra.mxu0 0.0
        %545 = vmatprep.subr.mxu0 0.0
        %546 = vmatpush2.msra.mxu0 0.0
        %547 = vmatprep.subr.mxu0 0.0
        %548 = vmatpush2.msra.mxu0 0.0
        %549 = vmatprep.subr.mxu0 0.0
        %550 = vmatpush2.msra.mxu0 0.0
        %551 = vmatprep.subr.mxu0 0.0
        %552 = vmatpush2.msra.mxu0 0.0
        %553 = vmatprep.subr.mxu0 0.0
        %554 = vmatpush2.msra.mxu0 0.0
        %555 = vmatprep.subr.mxu0 0.0
        %556 = vmatpush2.msra.mxu0 0.0
        %557 = vmatprep.subr.mxu0 0.0
        %558 = vmatpush2.msra.mxu0 0.0
        %559 = vmatprep.subr.mxu0 0.0
        %560 = vmatpush2.msra.mxu0 0.0
        %561 = vmatprep.subr.mxu0 0.0
        %562 = vmatpush2.msra.mxu0 0.0
        %563 = vmatprep.subr.mxu0 0.0
        %564 = vmatpush2.msra.mxu0 0.0
        %565 = vmatprep.mubr.f32.mxu0 0.0
        %566 = vmatmul.mubr.f32.gmra.mxu0 %v363
        %v567 = vpop.f32.mrf.mxu0
        %v568 = vadd.f32 0.0, %v567
        %v569 = vpop.f32.mrf.mxu0
        %v570 = vadd.f32 0.0, %v569
        %571 = vmatprep.mubr.f32.mxu0 0.0
        %572 = vmatmul.mubr.f32.gmra.mxu0 %v366
        %v573 = vpop.f32.mrf.mxu0
        %v574 = vadd.f32 0.0, %v573
        %v575 = vpop.f32.mrf.mxu0
        %v576 = vadd.f32 0.0, %v575
        %577 = vmatprep.mubr.f32.mxu0 0.0
        %578 = vmatmul.mubr.f32.gmra.mxu0 %v369
        %v579 = vpop.f32.mrf.mxu0
        %v580 = vadd.f32 0.0, %v579
        %v581 = vpop.f32.mrf.mxu0
        %v582 = vadd.f32 0.0, %v581
        %583 = vmatprep.mubr.f32.mxu0 0.0
        %584 = vmatmul.mubr.f32.gmra.mxu0 %v372
        %v585 = vpop.f32.mrf.mxu0
        %v586 = vadd.f32 0.0, %v585
        %v587 = vpop.f32.mrf.mxu0
        %v588 = vadd.f32 0.0, %v587
        %589 = vmatprep.mubr.f32.mxu0 0.0
        %590 = vmatmul.mubr.f32.gmra.mxu0 %v375
        %v591 = vpop.f32.mrf.mxu0
        %v592 = vadd.f32 0.0, %v591
        %v593 = vpop.f32.mrf.mxu0
        %v594 = vadd.f32 0.0, %v593
        %595 = vmatprep.mubr.f32.mxu0 0.0
        %596 = vmatmul.mubr.f32.gmra.mxu0 %v378
        %v597 = vpop.f32.mrf.mxu0
        %v598 = vadd.f32 0.0, %v597
        %v599 = vpop.f32.mrf.mxu0
        %v600 = vadd.f32 0.0, %v599
        %601 = vmatprep.mubr.f32.mxu0 0.0
        %602 = vmatmul.mubr.f32.gmra.mxu0 %v381
        %v603 = vpop.f32.mrf.mxu0
        %v604 = vadd.f32 0.0, %v603
        %v605 = vpop.f32.mrf.mxu0
        %v606 = vadd.f32 0.0, %v605
        %607 = vmatprep.mubr.f32.mxu0 0.0
        %608 = vmatmul.mubr.f32.gmra.mxu0 %v384
        %v609 = vpop.f32.mrf.mxu0
        %v610 = vadd.f32 0.0, %v609
        %v611 = vpop.f32.mrf.mxu0
        %v612 = vadd.f32 0.0, %v611
        %613 = vmatprep.mubr.f32.mxu0 0.0
        %614 = vmatmul.mubr.f32.gmra.mxu0 %v387
        %v615 = vpop.f32.mrf.mxu0
        %v616 = vadd.f32 0.0, %v615
        %v617 = vpop.f32.mrf.mxu0
        %v618 = vadd.f32 0.0, %v617
        %619 = vmatprep.mubr.f32.mxu0 0.0
        %620 = vmatmul.mubr.f32.gmra.mxu0 %v390
        %v621 = vpop.f32.mrf.mxu0
        %v622 = vadd.f32 0.0, %v621
        %v623 = vpop.f32.mrf.mxu0
        %v624 = vadd.f32 0.0, %v623
        %625 = vmatprep.mubr.f32.mxu0 0.0
        %626 = vmatmul.mubr.f32.gmra.mxu0 %v393
        %v627 = vpop.f32.mrf.mxu0
        %v628 = vadd.f32 0.0, %v627
        %v629 = vpop.f32.mrf.mxu0
        %v630 = vadd.f32 0.0, %v629
        %631 = vmatprep.mubr.f32.mxu0 0.0
        %632 = vmatmul.mubr.f32.gmra.mxu0 %v396
        %v633 = vpop.f32.mrf.mxu0
        %v634 = vadd.f32 0.0, %v633
        %v635 = vpop.f32.mrf.mxu0
        %v636 = vadd.f32 0.0, %v635
        %637 = vmatprep.mubr.f32.mxu0 0.0
        %638 = vmatmul.mubr.f32.gmra.mxu0 %v399
        %v639 = vpop.f32.mrf.mxu0
        %v640 = vadd.f32 0.0, %v639
        %v641 = vpop.f32.mrf.mxu0
        %v642 = vadd.f32 0.0, %v641
        %643 = vmatprep.mubr.f32.mxu0 0.0
        %644 = vmatmul.mubr.f32.gmra.mxu0 %v402
        %v645 = vpop.f32.mrf.mxu0
        %v646 = vadd.f32 0.0, %v645
        %v647 = vpop.f32.mrf.mxu0
        %v648 = vadd.f32 0.0, %v647
        %649 = vmatprep.mubr.f32.mxu0 0.0
        %650 = vmatmul.mubr.f32.gmra.mxu0 %v405
        %v651 = vpop.f32.mrf.mxu0
        %v652 = vadd.f32 0.0, %v651
        %v653 = vpop.f32.mrf.mxu0
        %v654 = vadd.f32 0.0, %v653
        %655 = vmatprep.mubr.f32.mxu0 0.0
        %656 = vmatmul.mubr.f32.gmra.mxu0 %v408
        %v657 = vpop.f32.mrf.mxu0
        %v658 = vadd.f32 0.0, %v657
        %v659 = vpop.f32.mrf.mxu0
        %v660 = vadd.f32 0.0, %v659
        %661 = vmatprep.mubr.f32.mxu0 0.0
        %662 = vmatmul.mubr.f32.gmra.mxu0 %v411
        %v663 = vpop.f32.mrf.mxu0
        %v664 = vadd.f32 0.0, %v663
        %v665 = vpop.f32.mrf.mxu0
        %v666 = vadd.f32 0.0, %v665
        %667 = vmatprep.mubr.f32.mxu0 0.0
        %668 = vmatmul.mubr.f32.gmra.mxu0 %v414
        %v669 = vpop.f32.mrf.mxu0
        %v670 = vadd.f32 0.0, %v669
        %v671 = vpop.f32.mrf.mxu0
        %v672 = vadd.f32 0.0, %v671
        %673 = vmatprep.mubr.f32.mxu0 0.0
        %674 = vmatmul.mubr.f32.gmra.mxu0 %v417
        %v675 = vpop.f32.mrf.mxu0
        %v676 = vadd.f32 0.0, %v675
        %v677 = vpop.f32.mrf.mxu0
        %v678 = vadd.f32 0.0, %v677
        %679 = vmatprep.mubr.f32.mxu0 0.0
        %680 = vmatmul.mubr.f32.gmra.mxu0 %v420
        %v681 = vpop.f32.mrf.mxu0
        %v682 = vadd.f32 0.0, %v681
        %v683 = vpop.f32.mrf.mxu0
        %v684 = vadd.f32 0.0, %v683
        %685 = vmatprep.mubr.f32.mxu0 0.0
        %686 = vmatmul.mubr.f32.gmra.mxu0 %v423
        %v687 = vpop.f32.mrf.mxu0
        %v688 = vadd.f32 0.0, %v687
        %v689 = vpop.f32.mrf.mxu0
        %v690 = vadd.f32 0.0, %v689
        %691 = vmatprep.mubr.f32.mxu0 0.0
        %692 = vmatmul.mubr.f32.gmra.mxu0 %v426
        %v693 = vpop.f32.mrf.mxu0
        %v694 = vadd.f32 0.0, %v693
        %v695 = vpop.f32.mrf.mxu0
        %v696 = vadd.f32 0.0, %v695
        %697 = vmatprep.mubr.f32.mxu0 0.0
        %698 = vmatmul.mubr.f32.gmra.mxu0 %v429
        %v699 = vpop.f32.mrf.mxu0
        %v700 = vadd.f32 0.0, %v699
        %v701 = vpop.f32.mrf.mxu0
        %v702 = vadd.f32 0.0, %v701
        %703 = vmatprep.mubr.f32.mxu0 0.0
        %704 = vmatmul.mubr.f32.gmra.mxu0 %v432
        %v705 = vpop.f32.mrf.mxu0
        %v706 = vadd.f32 0.0, %v705
        %v707 = vpop.f32.mrf.mxu0
        %v708 = vadd.f32 0.0, %v707
        %709 = vmatprep.mubr.f32.mxu0 0.0
        %710 = vmatmul.mubr.f32.gmra.mxu0 %v435
        %v711 = vpop.f32.mrf.mxu0
        %v712 = vadd.f32 0.0, %v711
        %v713 = vpop.f32.mrf.mxu0
        %v714 = vadd.f32 0.0, %v713
        %715 = vmatprep.mubr.f32.mxu0 0.0
        %716 = vmatmul.mubr.f32.gmra.mxu0 %v438
        %v717 = vpop.f32.mrf.mxu0
        %v718 = vadd.f32 0.0, %v717
        %v719 = vpop.f32.mrf.mxu0
        %v720 = vadd.f32 0.0, %v719
        %721 = vmatprep.mubr.f32.mxu0 0.0
        %722 = vmatmul.mubr.f32.gmra.mxu0 %v441
        %v723 = vpop.f32.mrf.mxu0
        %v724 = vadd.f32 0.0, %v723
        %v725 = vpop.f32.mrf.mxu0
        %v726 = vadd.f32 0.0, %v725
        %727 = vmatprep.mubr.f32.mxu0 0.0
        %728 = vmatmul.mubr.f32.gmra.mxu0 %v444
        %v729 = vpop.f32.mrf.mxu0
        %v730 = vadd.f32 0.0, %v729
        %v731 = vpop.f32.mrf.mxu0
        %v732 = vadd.f32 0.0, %v731
        %733 = vmatprep.mubr.f32.mxu0 0.0
        %734 = vmatmul.mubr.f32.gmra.mxu0 %v447
        %v735 = vpop.f32.mrf.mxu0
        %v736 = vadd.f32 0.0, %v735
        %v737 = vpop.f32.mrf.mxu0
        %v738 = vadd.f32 0.0, %v737
        %739 = vmatprep.mubr.f32.mxu0 0.0
        %740 = vmatmul.mubr.f32.gmra.mxu0 %v450
        %v741 = vpop.f32.mrf.mxu0
        %v742 = vadd.f32 0.0, %v741
        %v743 = vpop.f32.mrf.mxu0
        %v744 = vadd.f32 0.0, %v743
        %745 = vmatprep.mubr.f32.mxu0 0.0
        %746 = vmatmul.mubr.f32.gmra.mxu0 %v453
        %v747 = vpop.f32.mrf.mxu0
        %v748 = vadd.f32 0.0, %v747
        %v749 = vpop.f32.mrf.mxu0
        %v750 = vadd.f32 0.0, %v749
        %751 = vmatprep.mubr.f32.mxu0 0.0
        %752 = vmatmul.mubr.f32.gmra.mxu0 %v456
        %v753 = vpop.f32.mrf.mxu0
        %v754 = vadd.f32 0.0, %v753
        %v755 = vpop.f32.mrf.mxu0
        %v756 = vadd.f32 0.0, %v755
        %757 = vmatprep.mubr.f32.mxu0 0.0
        %758 = vmatmul.mubr.f32.gmra.mxu0 %v459
        %v759 = vpop.f32.mrf.mxu0
        %v760 = vadd.f32 0.0, %v759
        %v761 = vpop.f32.mrf.mxu0
        %v762 = vadd.f32 0.0, %v761
        %763 = vmatprep.mubr.f32.mxu0 0.0
        %764 = vmatmul.mubr.f32.gmra.mxu0 %v462
        %v765 = vpop.f32.mrf.mxu0
        %v766 = vadd.f32 0.0, %v765
        %v767 = vpop.f32.mrf.mxu0
        %v768 = vadd.f32 0.0, %v767
        %769 = vmatprep.mubr.f32.mxu0 0.0
        %770 = vmatmul.mubr.f32.gmra.mxu0 %v465
        %v771 = vpop.f32.mrf.mxu0
        %v772 = vadd.f32 0.0, %v771
        %v773 = vpop.f32.mrf.mxu0
        %v774 = vadd.f32 0.0, %v773
        %775 = vmatprep.mubr.f32.mxu0 0.0
        %776 = vmatmul.mubr.f32.gmra.mxu0 %v468
        %v777 = vpop.f32.mrf.mxu0
        %v778 = vadd.f32 0.0, %v777
        %v779 = vpop.f32.mrf.mxu0
        %v780 = vadd.f32 0.0, %v779
        %781 = vmatprep.mubr.f32.mxu0 0.0
        %782 = vmatmul.mubr.f32.gmra.mxu0 %v471
        %v783 = vpop.f32.mrf.mxu0
        %v784 = vadd.f32 0.0, %v783
        %v785 = vpop.f32.mrf.mxu0
        %v786 = vadd.f32 0.0, %v785
        %787 = vmatprep.mubr.f32.mxu0 0.0
        %788 = vmatmul.mubr.f32.gmra.mxu0 %v474
        %v789 = vpop.f32.mrf.mxu0
        %v790 = vadd.f32 0.0, %v789
        %v791 = vpop.f32.mrf.mxu0
        %v792 = vadd.f32 0.0, %v791
        %793 = vdwg.mxu0
        %794 = vmatprep.subr.mxu0 0.0
        %795 = vmatpush1.msra.mxu0 0.0
        %796 = vmatprep.subr.mxu0 0.0
        %797 = vmatpush1.msra.mxu0 0.0
        %798 = vmatprep.subr.mxu0 %v487
        %799 = vmatpush1.msra.mxu0 %v484
        %800 = vmatprep.subr.mxu0 %v348
        %801 = vmatpush1.msra.mxu0 %v347
        %802 = vmatprep.subr.mxu0 %v340
        %803 = vmatpush1.msra.mxu0 %v339
        %804 = vmatprep.subr.mxu0 %v332
        %805 = vmatpush1.msra.mxu0 %v331
        %806 = vmatprep.subr.mxu0 %v324
        %807 = vmatpush1.msra.mxu0 %v323
        %808 = vmatprep.subr.mxu0 %v316
        %809 = vmatpush1.msra.mxu0 %v315
        %810 = vmatprep.subr.mxu0 %v308
        %811 = vmatpush1.msra.mxu0 %v307
        %812 = vmatprep.subr.mxu0 %v300
        %813 = vmatpush1.msra.mxu0 %v299
        %814 = vmatprep.subr.mxu0 %v292
        %815 = vmatpush1.msra.mxu0 %v291
        %816 = vmatprep.subr.mxu0 %v284
        %817 = vmatpush1.msra.mxu0 %v283
        %818 = vmatprep.subr.mxu0 %v276
        %819 = vmatpush1.msra.mxu0 %v275
        %820 = vmatprep.subr.mxu0 %v268
        %821 = vmatpush1.msra.mxu0 %v267
        %822 = vmatprep.subr.mxu0 %v260
        %823 = vmatpush1.msra.mxu0 %v259
        %824 = vmatprep.subr.mxu0 %v252
        %825 = vmatpush1.msra.mxu0 %v251
        %826 = vmatprep.subr.mxu0 0.0
        %827 = vmatpush2.msra.mxu0 0.0
        %828 = vmatprep.subr.mxu0 0.0
        %829 = vmatpush2.msra.mxu0 0.0
        %830 = vmatprep.subr.mxu0 0.0
        %831 = vmatpush2.msra.mxu0 0.0
        %832 = vmatprep.subr.mxu0 0.0
        %833 = vmatpush2.msra.mxu0 0.0
        %834 = vmatprep.subr.mxu0 0.0
        %835 = vmatpush2.msra.mxu0 0.0
        %836 = vmatprep.subr.mxu0 0.0
        %837 = vmatpush2.msra.mxu0 0.0
        %838 = vmatprep.subr.mxu0 0.0
        %839 = vmatpush2.msra.mxu0 0.0
        %840 = vmatprep.subr.mxu0 0.0
        %841 = vmatpush2.msra.mxu0 0.0
        %842 = vmatprep.subr.mxu0 0.0
        %843 = vmatpush2.msra.mxu0 0.0
        %844 = vmatprep.subr.mxu0 0.0
        %845 = vmatpush2.msra.mxu0 0.0
        %846 = vmatprep.subr.mxu0 0.0
        %847 = vmatpush2.msra.mxu0 0.0
        %848 = vmatprep.subr.mxu0 0.0
        %849 = vmatpush2.msra.mxu0 0.0
        %850 = vmatprep.subr.mxu0 0.0
        %851 = vmatpush2.msra.mxu0 0.0
        %852 = vmatprep.subr.mxu0 0.0
        %853 = vmatpush2.msra.mxu0 0.0
        %854 = vmatprep.subr.mxu0 0.0
        %855 = vmatpush2.msra.mxu0 0.0
        %856 = vmatprep.subr.mxu0 0.0
        %857 = vmatpush2.msra.mxu0 0.0
        %858 = vmatprep.mubr.f32.mxu0 0.0
        %859 = vmatmul.mubr.f32.gmra.mxu0 %v363
        %v860 = vpop.f32.mrf.mxu0
        %v861 = vadd.f32 0.0, %v860
        %v862 = vpop.f32.mrf.mxu0
        %v863 = vadd.f32 0.0, %v862
        %864 = vmatprep.mubr.f32.mxu0 0.0
        %865 = vmatmul.mubr.f32.gmra.mxu0 %v366
        %v866 = vpop.f32.mrf.mxu0
        %v867 = vadd.f32 0.0, %v866
        %v868 = vpop.f32.mrf.mxu0
        %v869 = vadd.f32 0.0, %v868
        %870 = vmatprep.mubr.f32.mxu0 0.0
        %871 = vmatmul.mubr.f32.gmra.mxu0 %v369
        %v872 = vpop.f32.mrf.mxu0
        %v873 = vadd.f32 0.0, %v872
        %v874 = vpop.f32.mrf.mxu0
        %v875 = vadd.f32 0.0, %v874
        %876 = vmatprep.mubr.f32.mxu0 0.0
        %877 = vmatmul.mubr.f32.gmra.mxu0 %v372
        %v878 = vpop.f32.mrf.mxu0
        %v879 = vadd.f32 0.0, %v878
        %v880 = vpop.f32.mrf.mxu0
        %v881 = vadd.f32 0.0, %v880
        %882 = vmatprep.mubr.f32.mxu0 0.0
        %883 = vmatmul.mubr.f32.gmra.mxu0 %v375
        %v884 = vpop.f32.mrf.mxu0
        %v885 = vadd.f32 0.0, %v884
        %v886 = vpop.f32.mrf.mxu0
        %v887 = vadd.f32 0.0, %v886
        %888 = vmatprep.mubr.f32.mxu0 0.0
        %889 = vmatmul.mubr.f32.gmra.mxu0 %v378
        %v890 = vpop.f32.mrf.mxu0
        %v891 = vadd.f32 0.0, %v890
        %v892 = vpop.f32.mrf.mxu0
        %v893 = vadd.f32 0.0, %v892
        %894 = vmatprep.mubr.f32.mxu0 0.0
        %895 = vmatmul.mubr.f32.gmra.mxu0 %v381
        %v896 = vpop.f32.mrf.mxu0
        %v897 = vadd.f32 0.0, %v896
        %v898 = vpop.f32.mrf.mxu0
        %v899 = vadd.f32 0.0, %v898
        %900 = vmatprep.mubr.f32.mxu0 0.0
        %901 = vmatmul.mubr.f32.gmra.mxu0 %v384
        %v902 = vpop.f32.mrf.mxu0
        %v903 = vadd.f32 0.0, %v902
        %v904 = vpop.f32.mrf.mxu0
        %v905 = vadd.f32 0.0, %v904
        %906 = vmatprep.mubr.f32.mxu0 0.0
        %907 = vmatmul.mubr.f32.gmra.mxu0 %v387
        %v908 = vpop.f32.mrf.mxu0
        %v909 = vadd.f32 0.0, %v908
        %v910 = vpop.f32.mrf.mxu0
        %v911 = vadd.f32 0.0, %v910
        %912 = vmatprep.mubr.f32.mxu0 0.0
        %913 = vmatmul.mubr.f32.gmra.mxu0 %v390
        %v914 = vpop.f32.mrf.mxu0
        %v915 = vadd.f32 0.0, %v914
        %v916 = vpop.f32.mrf.mxu0
        %v917 = vadd.f32 0.0, %v916
        %918 = vmatprep.mubr.f32.mxu0 0.0
        %919 = vmatmul.mubr.f32.gmra.mxu0 %v393
        %v920 = vpop.f32.mrf.mxu0
        %v921 = vadd.f32 0.0, %v920
        %v922 = vpop.f32.mrf.mxu0
        %v923 = vadd.f32 0.0, %v922
        %924 = vmatprep.mubr.f32.mxu0 0.0
        %925 = vmatmul.mubr.f32.gmra.mxu0 %v396
        %v926 = vpop.f32.mrf.mxu0
        %v927 = vadd.f32 0.0, %v926
        %v928 = vpop.f32.mrf.mxu0
        %v929 = vadd.f32 0.0, %v928
        %930 = vmatprep.mubr.f32.mxu0 0.0
        %931 = vmatmul.mubr.f32.gmra.mxu0 %v399
        %v932 = vpop.f32.mrf.mxu0
        %v933 = vadd.f32 0.0, %v932
        %v934 = vpop.f32.mrf.mxu0
        %v935 = vadd.f32 0.0, %v934
        %936 = vmatprep.mubr.f32.mxu0 0.0
        %937 = vmatmul.mubr.f32.gmra.mxu0 %v402
        %v938 = vpop.f32.mrf.mxu0
        %v939 = vadd.f32 0.0, %v938
        %v940 = vpop.f32.mrf.mxu0
        %v941 = vadd.f32 0.0, %v940
        %942 = vmatprep.mubr.f32.mxu0 0.0
        %943 = vmatmul.mubr.f32.gmra.mxu0 %v405
        %v944 = vpop.f32.mrf.mxu0
        %v945 = vadd.f32 0.0, %v944
        %v946 = vpop.f32.mrf.mxu0
        %v947 = vadd.f32 0.0, %v946
        %948 = vmatprep.mubr.f32.mxu0 0.0
        %949 = vmatmul.mubr.f32.gmra.mxu0 %v408
        %v950 = vpop.f32.mrf.mxu0
        %v951 = vadd.f32 0.0, %v950
        %v952 = vpop.f32.mrf.mxu0
        %v953 = vadd.f32 0.0, %v952
        %954 = vmatprep.mubr.f32.mxu0 0.0
        %955 = vmatmul.mubr.f32.gmra.mxu0 %v411
        %v956 = vpop.f32.mrf.mxu0
        %v957 = vadd.f32 0.0, %v956
        %v958 = vpop.f32.mrf.mxu0
        %v959 = vadd.f32 0.0, %v958
        %960 = vmatprep.mubr.f32.mxu0 0.0
        %961 = vmatmul.mubr.f32.gmra.mxu0 %v414
        %v962 = vpop.f32.mrf.mxu0
        %v963 = vadd.f32 0.0, %v962
        %v964 = vpop.f32.mrf.mxu0
        %v965 = vadd.f32 0.0, %v964
        %966 = vmatprep.mubr.f32.mxu0 0.0
        %967 = vmatmul.mubr.f32.gmra.mxu0 %v417
        %v968 = vpop.f32.mrf.mxu0
        %v969 = vadd.f32 0.0, %v968
        %v970 = vpop.f32.mrf.mxu0
        %v971 = vadd.f32 0.0, %v970
        %972 = vmatprep.mubr.f32.mxu0 0.0
        %973 = vmatmul.mubr.f32.gmra.mxu0 %v420
        %v974 = vpop.f32.mrf.mxu0
        %v975 = vadd.f32 0.0, %v974
        %v976 = vpop.f32.mrf.mxu0
        %v977 = vadd.f32 0.0, %v976
        %978 = vmatprep.mubr.f32.mxu0 0.0
        %979 = vmatmul.mubr.f32.gmra.mxu0 %v423
        %v980 = vpop.f32.mrf.mxu0
        %v981 = vadd.f32 0.0, %v980
        %v982 = vpop.f32.mrf.mxu0
        %v983 = vadd.f32 0.0, %v982
        %984 = vmatprep.mubr.f32.mxu0 0.0
        %985 = vmatmul.mubr.f32.gmra.mxu0 %v426
        %v986 = vpop.f32.mrf.mxu0
        %v987 = vadd.f32 0.0, %v986
        %v988 = vpop.f32.mrf.mxu0
        %v989 = vadd.f32 0.0, %v988
        %990 = vmatprep.mubr.f32.mxu0 0.0
        %991 = vmatmul.mubr.f32.gmra.mxu0 %v429
        %v992 = vpop.f32.mrf.mxu0
        %v993 = vadd.f32 0.0, %v992
        %v994 = vpop.f32.mrf.mxu0
        %v995 = vadd.f32 0.0, %v994
        %996 = vmatprep.mubr.f32.mxu0 0.0
        %997 = vmatmul.mubr.f32.gmra.mxu0 %v432
        %v998 = vpop.f32.mrf.mxu0
        %v999 = vadd.f32 0.0, %v998
        %v1000 = vpop.f32.mrf.mxu0
        %v1001 = vadd.f32 0.0, %v1000
        %1002 = vmatprep.mubr.f32.mxu0 0.0
        %1003 = vmatmul.mubr.f32.gmra.mxu0 %v435
        %v1004 = vpop.f32.mrf.mxu0
        %v1005 = vadd.f32 0.0, %v1004
        %v1006 = vpop.f32.mrf.mxu0
        %v1007 = vadd.f32 0.0, %v1006
        %1008 = vmatprep.mubr.f32.mxu0 0.0
        %1009 = vmatmul.mubr.f32.gmra.mxu0 %v438
        %v1010 = vpop.f32.mrf.mxu0
        %v1011 = vadd.f32 0.0, %v1010
        %v1012 = vpop.f32.mrf.mxu0
        %v1013 = vadd.f32 0.0, %v1012
        %1014 = vmatprep.mubr.f32.mxu0 0.0
        %1015 = vmatmul.mubr.f32.gmra.mxu0 %v441
        %v1016 = vpop.f32.mrf.mxu0
        %v1017 = vadd.f32 0.0, %v1016
        %v1018 = vpop.f32.mrf.mxu0
        %v1019 = vadd.f32 0.0, %v1018
        %1020 = vmatprep.mubr.f32.mxu0 0.0
        %1021 = vmatmul.mubr.f32.gmra.mxu0 %v444
        %v1022 = vpop.f32.mrf.mxu0
        %v1023 = vadd.f32 0.0, %v1022
        %v1024 = vpop.f32.mrf.mxu0
        %v1025 = vadd.f32 0.0, %v1024
        %1026 = vmatprep.mubr.f32.mxu0 0.0
        %1027 = vmatmul.mubr.f32.gmra.mxu0 %v447
        %v1028 = vpop.f32.mrf.mxu0
        %v1029 = vadd.f32 0.0, %v1028
        %v1030 = vpop.f32.mrf.mxu0
        %v1031 = vadd.f32 0.0, %v1030
        %1032 = vmatprep.mubr.f32.mxu0 0.0
        %1033 = vmatmul.mubr.f32.gmra.mxu0 %v450
        %v1034 = vpop.f32.mrf.mxu0
        %v1035 = vadd.f32 0.0, %v1034
        %v1036 = vpop.f32.mrf.mxu0
        %v1037 = vadd.f32 0.0, %v1036
        %1038 = vmatprep.mubr.f32.mxu0 0.0
        %1039 = vmatmul.mubr.f32.gmra.mxu0 %v453
        %v1040 = vpop.f32.mrf.mxu0
        %v1041 = vadd.f32 0.0, %v1040
        %v1042 = vpop.f32.mrf.mxu0
        %v1043 = vadd.f32 0.0, %v1042
        %1044 = vmatprep.mubr.f32.mxu0 0.0
        %1045 = vmatmul.mubr.f32.gmra.mxu0 %v456
        %v1046 = vpop.f32.mrf.mxu0
        %v1047 = vadd.f32 0.0, %v1046
        %v1048 = vpop.f32.mrf.mxu0
        %v1049 = vadd.f32 0.0, %v1048
        %1050 = vmatprep.mubr.f32.mxu0 0.0
        %1051 = vmatmul.mubr.f32.gmra.mxu0 %v459
        %v1052 = vpop.f32.mrf.mxu0
        %v1053 = vadd.f32 0.0, %v1052
        %v1054 = vpop.f32.mrf.mxu0
        %v1055 = vadd.f32 0.0, %v1054
        %1056 = vmatprep.mubr.f32.mxu0 0.0
        %1057 = vmatmul.mubr.f32.gmra.mxu0 %v462
        %v1058 = vpop.f32.mrf.mxu0
        %v1059 = vadd.f32 0.0, %v1058
        %v1060 = vpop.f32.mrf.mxu0
        %v1061 = vadd.f32 0.0, %v1060
        %1062 = vmatprep.mubr.f32.mxu0 0.0
        %1063 = vmatmul.mubr.f32.gmra.mxu0 %v465
        %v1064 = vpop.f32.mrf.mxu0
        %v1065 = vadd.f32 0.0, %v1064
        %v1066 = vpop.f32.mrf.mxu0
        %v1067 = vadd.f32 0.0, %v1066
        %1068 = vmatprep.mubr.f32.mxu0 0.0
        %1069 = vmatmul.mubr.f32.gmra.mxu0 %v468
        %v1070 = vpop.f32.mrf.mxu0
        %v1071 = vadd.f32 0.0, %v1070
        %v1072 = vpop.f32.mrf.mxu0
        %v1073 = vadd.f32 0.0, %v1072
        %1074 = vmatprep.mubr.f32.mxu0 0.0
        %1075 = vmatmul.mubr.f32.gmra.mxu0 %v471
        %v1076 = vpop.f32.mrf.mxu0
        %v1077 = vadd.f32 0.0, %v1076
        %v1078 = vpop.f32.mrf.mxu0
        %v1079 = vadd.f32 0.0, %v1078
        %1080 = vmatprep.mubr.f32.mxu0 0.0
        %1081 = vmatmul.mubr.f32.gmra.mxu0 %v474
        %v1082 = vpop.f32.mrf.mxu0
        %v1083 = vadd.f32 0.0, %v1082
        %v1084 = vpop.f32.mrf.mxu0
        %v1085 = vadd.f32 0.0, %v1084
        %1086 = vdwg.mxu0
        %1087 = vmatprep.subr.mxu0 0.0
        %1088 = vmatpush1.msra.mxu0 0.0
        %1089 = vmatprep.subr.mxu0 0.0
        %1090 = vmatpush1.msra.mxu0 0.0
        %1091 = vmatprep.subr.mxu0 %v493
        %1092 = vmatpush1.msra.mxu0 %v490
        %1093 = vmatprep.subr.mxu0 %v350
        %1094 = vmatpush1.msra.mxu0 %v349
        %1095 = vmatprep.subr.mxu0 %v342
        %1096 = vmatpush1.msra.mxu0 %v341
        %1097 = vmatprep.subr.mxu0 %v334
        %1098 = vmatpush1.msra.mxu0 %v333
        %1099 = vmatprep.subr.mxu0 %v326
        %1100 = vmatpush1.msra.mxu0 %v325
        %1101 = vmatprep.subr.mxu0 %v318
        %1102 = vmatpush1.msra.mxu0 %v317
        %1103 = vmatprep.subr.mxu0 %v310
        %1104 = vmatpush1.msra.mxu0 %v309
        %1105 = vmatprep.subr.mxu0 %v302
        %1106 = vmatpush1.msra.mxu0 %v301
        %1107 = vmatprep.subr.mxu0 %v294
        %1108 = vmatpush1.msra.mxu0 %v293
        %1109 = vmatprep.subr.mxu0 %v286
        %1110 = vmatpush1.msra.mxu0 %v285
        %1111 = vmatprep.subr.mxu0 %v278
        %1112 = vmatpush1.msra.mxu0 %v277
        %1113 = vmatprep.subr.mxu0 %v270
        %1114 = vmatpush1.msra.mxu0 %v269
        %1115 = vmatprep.subr.mxu0 %v262
        %1116 = vmatpush1.msra.mxu0 %v261
        %1117 = vmatprep.subr.mxu0 %v254
        %1118 = vmatpush1.msra.mxu0 %v253
        %1119 = vmatprep.subr.mxu0 0.0
        %1120 = vmatpush2.msra.mxu0 0.0
        %1121 = vmatprep.subr.mxu0 0.0
        %1122 = vmatpush2.msra.mxu0 0.0
        %1123 = vmatprep.subr.mxu0 0.0
        %1124 = vmatpush2.msra.mxu0 0.0
        %1125 = vmatprep.subr.mxu0 0.0
        %1126 = vmatpush2.msra.mxu0 0.0
        %1127 = vmatprep.subr.mxu0 0.0
        %1128 = vmatpush2.msra.mxu0 0.0
        %1129 = vmatprep.subr.mxu0 0.0
        %1130 = vmatpush2.msra.mxu0 0.0
        %1131 = vmatprep.subr.mxu0 0.0
        %1132 = vmatpush2.msra.mxu0 0.0
        %1133 = vmatprep.subr.mxu0 0.0
        %1134 = vmatpush2.msra.mxu0 0.0
        %1135 = vmatprep.subr.mxu0 0.0
        %1136 = vmatpush2.msra.mxu0 0.0
        %1137 = vmatprep.subr.mxu0 0.0
        %1138 = vmatpush2.msra.mxu0 0.0
        %1139 = vmatprep.subr.mxu0 0.0
        %1140 = vmatpush2.msra.mxu0 0.0
        %1141 = vmatprep.subr.mxu0 0.0
        %1142 = vmatpush2.msra.mxu0 0.0
        %1143 = vmatprep.subr.mxu0 0.0
        %1144 = vmatpush2.msra.mxu0 0.0
        %1145 = vmatprep.subr.mxu0 0.0
        %1146 = vmatpush2.msra.mxu0 0.0
        %1147 = vmatprep.subr.mxu0 0.0
        %1148 = vmatpush2.msra.mxu0 0.0
        %1149 = vmatprep.subr.mxu0 0.0
        %1150 = vmatpush2.msra.mxu0 0.0
        %1151 = vmatprep.mubr.f32.mxu0 0.0
        %1152 = vmatmul.mubr.f32.gmra.mxu0 %v363
        %v1153 = vpop.f32.mrf.mxu0
        %v1154 = vadd.f32 0.0, %v1153
        %v1155 = vpop.f32.mrf.mxu0
        %v1156 = vadd.f32 0.0, %v1155
        %1157 = vmatprep.mubr.f32.mxu0 0.0
        %1158 = vmatmul.mubr.f32.gmra.mxu0 %v366
        %v1159 = vpop.f32.mrf.mxu0
        %v1160 = vadd.f32 0.0, %v1159
        %v1161 = vpop.f32.mrf.mxu0
        %v1162 = vadd.f32 0.0, %v1161
        %1163 = vmatprep.mubr.f32.mxu0 0.0
        %1164 = vmatmul.mubr.f32.gmra.mxu0 %v369
        %v1165 = vpop.f32.mrf.mxu0
        %v1166 = vadd.f32 0.0, %v1165
        %v1167 = vpop.f32.mrf.mxu0
        %v1168 = vadd.f32 0.0, %v1167
        %1169 = vmatprep.mubr.f32.mxu0 0.0
        %1170 = vmatmul.mubr.f32.gmra.mxu0 %v372
        %v1171 = vpop.f32.mrf.mxu0
        %v1172 = vadd.f32 0.0, %v1171
        %v1173 = vpop.f32.mrf.mxu0
        %v1174 = vadd.f32 0.0, %v1173
        %1175 = vmatprep.mubr.f32.mxu0 0.0
        %1176 = vmatmul.mubr.f32.gmra.mxu0 %v375
        %v1177 = vpop.f32.mrf.mxu0
        %v1178 = vadd.f32 0.0, %v1177
        %v1179 = vpop.f32.mrf.mxu0
        %v1180 = vadd.f32 0.0, %v1179
        %1181 = vmatprep.mubr.f32.mxu0 0.0
        %1182 = vmatmul.mubr.f32.gmra.mxu0 %v378
        %v1183 = vpop.f32.mrf.mxu0
        %v1184 = vadd.f32 0.0, %v1183
        %v1185 = vpop.f32.mrf.mxu0
        %v1186 = vadd.f32 0.0, %v1185
        %1187 = vmatprep.mubr.f32.mxu0 0.0
        %1188 = vmatmul.mubr.f32.gmra.mxu0 %v381
        %v1189 = vpop.f32.mrf.mxu0
        %v1190 = vadd.f32 0.0, %v1189
        %v1191 = vpop.f32.mrf.mxu0
        %v1192 = vadd.f32 0.0, %v1191
        %1193 = vmatprep.mubr.f32.mxu0 0.0
        %1194 = vmatmul.mubr.f32.gmra.mxu0 %v384
        %v1195 = vpop.f32.mrf.mxu0
        %v1196 = vadd.f32 0.0, %v1195
        %v1197 = vpop.f32.mrf.mxu0
        %v1198 = vadd.f32 0.0, %v1197
        %1199 = vmatprep.mubr.f32.mxu0 0.0
        %1200 = vmatmul.mubr.f32.gmra.mxu0 %v387
        %v1201 = vpop.f32.mrf.mxu0
        %v1202 = vadd.f32 0.0, %v1201
        %v1203 = vpop.f32.mrf.mxu0
        %v1204 = vadd.f32 0.0, %v1203
        %1205 = vmatprep.mubr.f32.mxu0 0.0
        %1206 = vmatmul.mubr.f32.gmra.mxu0 %v390
        %v1207 = vpop.f32.mrf.mxu0
        %v1208 = vadd.f32 0.0, %v1207
        %v1209 = vpop.f32.mrf.mxu0
        %v1210 = vadd.f32 0.0, %v1209
        %1211 = vmatprep.mubr.f32.mxu0 0.0
        %1212 = vmatmul.mubr.f32.gmra.mxu0 %v393
        %v1213 = vpop.f32.mrf.mxu0
        %v1214 = vadd.f32 0.0, %v1213
        %v1215 = vpop.f32.mrf.mxu0
        %v1216 = vadd.f32 0.0, %v1215
        %1217 = vmatprep.mubr.f32.mxu0 0.0
        %1218 = vmatmul.mubr.f32.gmra.mxu0 %v396
        %v1219 = vpop.f32.mrf.mxu0
        %v1220 = vadd.f32 0.0, %v1219
        %v1221 = vpop.f32.mrf.mxu0
        %v1222 = vadd.f32 0.0, %v1221
        %1223 = vmatprep.mubr.f32.mxu0 0.0
        %1224 = vmatmul.mubr.f32.gmra.mxu0 %v399
        %v1225 = vpop.f32.mrf.mxu0
        %v1226 = vadd.f32 0.0, %v1225
        %v1227 = vpop.f32.mrf.mxu0
        %v1228 = vadd.f32 0.0, %v1227
        %1229 = vmatprep.mubr.f32.mxu0 0.0
        %1230 = vmatmul.mubr.f32.gmra.mxu0 %v402
        %v1231 = vpop.f32.mrf.mxu0
        %v1232 = vadd.f32 0.0, %v1231
        %v1233 = vpop.f32.mrf.mxu0
        %v1234 = vadd.f32 0.0, %v1233
        %1235 = vmatprep.mubr.f32.mxu0 0.0
        %1236 = vmatmul.mubr.f32.gmra.mxu0 %v405
        %v1237 = vpop.f32.mrf.mxu0
        %v1238 = vadd.f32 0.0, %v1237
        %v1239 = vpop.f32.mrf.mxu0
        %v1240 = vadd.f32 0.0, %v1239
        %1241 = vmatprep.mubr.f32.mxu0 0.0
        %1242 = vmatmul.mubr.f32.gmra.mxu0 %v408
        %v1243 = vpop.f32.mrf.mxu0
        %v1244 = vadd.f32 0.0, %v1243
        %v1245 = vpop.f32.mrf.mxu0
        %v1246 = vadd.f32 0.0, %v1245
        %1247 = vmatprep.mubr.f32.mxu0 0.0
        %1248 = vmatmul.mubr.f32.gmra.mxu0 %v411
        %v1249 = vpop.f32.mrf.mxu0
        %v1250 = vadd.f32 0.0, %v1249
        %v1251 = vpop.f32.mrf.mxu0
        %v1252 = vadd.f32 0.0, %v1251
        %1253 = vmatprep.mubr.f32.mxu0 0.0
        %1254 = vmatmul.mubr.f32.gmra.mxu0 %v414
        %v1255 = vpop.f32.mrf.mxu0
        %v1256 = vadd.f32 0.0, %v1255
        %v1257 = vpop.f32.mrf.mxu0
        %v1258 = vadd.f32 0.0, %v1257
        %1259 = vmatprep.mubr.f32.mxu0 0.0
        %1260 = vmatmul.mubr.f32.gmra.mxu0 %v417
        %v1261 = vpop.f32.mrf.mxu0
        %v1262 = vadd.f32 0.0, %v1261
        %v1263 = vpop.f32.mrf.mxu0
        %v1264 = vadd.f32 0.0, %v1263
        %1265 = vmatprep.mubr.f32.mxu0 0.0
        %1266 = vmatmul.mubr.f32.gmra.mxu0 %v420
        %v1267 = vpop.f32.mrf.mxu0
        %v1268 = vadd.f32 0.0, %v1267
        %v1269 = vpop.f32.mrf.mxu0
        %v1270 = vadd.f32 0.0, %v1269
        %1271 = vmatprep.mubr.f32.mxu0 0.0
        %1272 = vmatmul.mubr.f32.gmra.mxu0 %v423
        %v1273 = vpop.f32.mrf.mxu0
        %v1274 = vadd.f32 0.0, %v1273
        %v1275 = vpop.f32.mrf.mxu0
        %v1276 = vadd.f32 0.0, %v1275
        %1277 = vmatprep.mubr.f32.mxu0 0.0
        %1278 = vmatmul.mubr.f32.gmra.mxu0 %v426
        %v1279 = vpop.f32.mrf.mxu0
        %v1280 = vadd.f32 0.0, %v1279
        %v1281 = vpop.f32.mrf.mxu0
        %v1282 = vadd.f32 0.0, %v1281
        %1283 = vmatprep.mubr.f32.mxu0 0.0
        %1284 = vmatmul.mubr.f32.gmra.mxu0 %v429
        %v1285 = vpop.f32.mrf.mxu0
        %v1286 = vadd.f32 0.0, %v1285
        %v1287 = vpop.f32.mrf.mxu0
        %v1288 = vadd.f32 0.0, %v1287
        %1289 = vmatprep.mubr.f32.mxu0 0.0
        %1290 = vmatmul.mubr.f32.gmra.mxu0 %v432
        %v1291 = vpop.f32.mrf.mxu0
        %v1292 = vadd.f32 0.0, %v1291
        %v1293 = vpop.f32.mrf.mxu0
        %v1294 = vadd.f32 0.0, %v1293
        %1295 = vmatprep.mubr.f32.mxu0 0.0
        %1296 = vmatmul.mubr.f32.gmra.mxu0 %v435
        %v1297 = vpop.f32.mrf.mxu0
        %v1298 = vadd.f32 0.0, %v1297
        %v1299 = vpop.f32.mrf.mxu0
        %v1300 = vadd.f32 0.0, %v1299
        %1301 = vmatprep.mubr.f32.mxu0 0.0
        %1302 = vmatmul.mubr.f32.gmra.mxu0 %v438
        %v1303 = vpop.f32.mrf.mxu0
        %v1304 = vadd.f32 0.0, %v1303
        %v1305 = vpop.f32.mrf.mxu0
        %v1306 = vadd.f32 0.0, %v1305
        %1307 = vmatprep.mubr.f32.mxu0 0.0
        %1308 = vmatmul.mubr.f32.gmra.mxu0 %v441
        %v1309 = vpop.f32.mrf.mxu0
        %v1310 = vadd.f32 0.0, %v1309
        %v1311 = vpop.f32.mrf.mxu0
        %v1312 = vadd.f32 0.0, %v1311
        %1313 = vmatprep.mubr.f32.mxu0 0.0
        %1314 = vmatmul.mubr.f32.gmra.mxu0 %v444
        %v1315 = vpop.f32.mrf.mxu0
        %v1316 = vadd.f32 0.0, %v1315
        %v1317 = vpop.f32.mrf.mxu0
        %v1318 = vadd.f32 0.0, %v1317
        %1319 = vmatprep.mubr.f32.mxu0 0.0
        %1320 = vmatmul.mubr.f32.gmra.mxu0 %v447
        %v1321 = vpop.f32.mrf.mxu0
        %v1322 = vadd.f32 0.0, %v1321
        %v1323 = vpop.f32.mrf.mxu0
        %v1324 = vadd.f32 0.0, %v1323
        %1325 = vmatprep.mubr.f32.mxu0 0.0
        %1326 = vmatmul.mubr.f32.gmra.mxu0 %v450
        %v1327 = vpop.f32.mrf.mxu0
        %v1328 = vadd.f32 0.0, %v1327
        %v1329 = vpop.f32.mrf.mxu0
        %v1330 = vadd.f32 0.0, %v1329
        %1331 = vmatprep.mubr.f32.mxu0 0.0
        %1332 = vmatmul.mubr.f32.gmra.mxu0 %v453
        %v1333 = vpop.f32.mrf.mxu0
        %v1334 = vadd.f32 0.0, %v1333
        %v1335 = vpop.f32.mrf.mxu0
        %v1336 = vadd.f32 0.0, %v1335
        %1337 = vmatprep.mubr.f32.mxu0 0.0
        %1338 = vmatmul.mubr.f32.gmra.mxu0 %v456
        %v1339 = vpop.f32.mrf.mxu0
        %v1340 = vadd.f32 0.0, %v1339
        %v1341 = vpop.f32.mrf.mxu0
        %v1342 = vadd.f32 0.0, %v1341
        %1343 = vmatprep.mubr.f32.mxu0 0.0
        %1344 = vmatmul.mubr.f32.gmra.mxu0 %v459
        %v1345 = vpop.f32.mrf.mxu0
        %v1346 = vadd.f32 0.0, %v1345
        %v1347 = vpop.f32.mrf.mxu0
        %v1348 = vadd.f32 0.0, %v1347
        %1349 = vmatprep.mubr.f32.mxu0 0.0
        %1350 = vmatmul.mubr.f32.gmra.mxu0 %v462
        %v1351 = vpop.f32.mrf.mxu0
        %v1352 = vadd.f32 0.0, %v1351
        %v1353 = vpop.f32.mrf.mxu0
        %v1354 = vadd.f32 0.0, %v1353
        %1355 = vmatprep.mubr.f32.mxu0 0.0
        %1356 = vmatmul.mubr.f32.gmra.mxu0 %v465
        %v1357 = vpop.f32.mrf.mxu0
        %v1358 = vadd.f32 0.0, %v1357
        %v1359 = vpop.f32.mrf.mxu0
        %v1360 = vadd.f32 0.0, %v1359
        %1361 = vmatprep.mubr.f32.mxu0 0.0
        %1362 = vmatmul.mubr.f32.gmra.mxu0 %v468
        %v1363 = vpop.f32.mrf.mxu0
        %v1364 = vadd.f32 0.0, %v1363
        %v1365 = vpop.f32.mrf.mxu0
        %v1366 = vadd.f32 0.0, %v1365
        %1367 = vmatprep.mubr.f32.mxu0 0.0
        %1368 = vmatmul.mubr.f32.gmra.mxu0 %v471
        %v1369 = vpop.f32.mrf.mxu0
        %v1370 = vadd.f32 0.0, %v1369
        %v1371 = vpop.f32.mrf.mxu0
        %v1372 = vadd.f32 0.0, %v1371
        %1373 = vmatprep.mubr.f32.mxu0 0.0
        %1374 = vmatmul.mubr.f32.gmra.mxu0 %v474
        %v1375 = vpop.f32.mrf.mxu0
        %v1376 = vadd.f32 0.0, %v1375
        %v1377 = vpop.f32.mrf.mxu0
        %v1378 = vadd.f32 0.0, %v1377
        %1379 = vdwg.mxu0
        %1380 = vmatprep.subr.mxu0 0.0
        %1381 = vmatpush1.msra.mxu0 0.0
        %1382 = vmatprep.subr.mxu0 0.0
        %1383 = vmatpush1.msra.mxu0 0.0
        %1384 = vmatprep.subr.mxu0 %v499
        %1385 = vmatpush1.msra.mxu0 %v496
        %1386 = vmatprep.subr.mxu0 %v352
        %1387 = vmatpush1.msra.mxu0 %v351
        %1388 = vmatprep.subr.mxu0 %v344
        %1389 = vmatpush1.msra.mxu0 %v343
        %1390 = vmatprep.subr.mxu0 %v336
        %1391 = vmatpush1.msra.mxu0 %v335
        %1392 = vmatprep.subr.mxu0 %v328
        %1393 = vmatpush1.msra.mxu0 %v327
        %1394 = vmatprep.subr.mxu0 %v320
        %1395 = vmatpush1.msra.mxu0 %v319
        %1396 = vmatprep.subr.mxu0 %v312
        %1397 = vmatpush1.msra.mxu0 %v311
        %1398 = vmatprep.subr.mxu0 %v304
        %1399 = vmatpush1.msra.mxu0 %v303
        %1400 = vmatprep.subr.mxu0 %v296
        %1401 = vmatpush1.msra.mxu0 %v295
        %1402 = vmatprep.subr.mxu0 %v288
        %1403 = vmatpush1.msra.mxu0 %v287
        %1404 = vmatprep.subr.mxu0 %v280
        %1405 = vmatpush1.msra.mxu0 %v279
        %1406 = vmatprep.subr.mxu0 %v272
        %1407 = vmatpush1.msra.mxu0 %v271
        %1408 = vmatprep.subr.mxu0 %v264
        %1409 = vmatpush1.msra.mxu0 %v263
        %1410 = vmatprep.subr.mxu0 %v256
        %1411 = vmatpush1.msra.mxu0 %v255
        %1412 = vmatprep.subr.mxu0 0.0
        %1413 = vmatpush2.msra.mxu0 0.0
        %1414 = vmatprep.subr.mxu0 0.0
        %1415 = vmatpush2.msra.mxu0 0.0
        %1416 = vmatprep.subr.mxu0 0.0
        %1417 = vmatpush2.msra.mxu0 0.0
        %1418 = vmatprep.subr.mxu0 0.0
        %1419 = vmatpush2.msra.mxu0 0.0
        %1420 = vmatprep.subr.mxu0 0.0
        %1421 = vmatpush2.msra.mxu0 0.0
        %1422 = vmatprep.subr.mxu0 0.0
        %1423 = vmatpush2.msra.mxu0 0.0
        %1424 = vmatprep.subr.mxu0 0.0
        %1425 = vmatpush2.msra.mxu0 0.0
        %1426 = vmatprep.subr.mxu0 0.0
        %1427 = vmatpush2.msra.mxu0 0.0
        %1428 = vmatprep.subr.mxu0 0.0
        %1429 = vmatpush2.msra.mxu0 0.0
        %1430 = vmatprep.subr.mxu0 0.0
        %1431 = vmatpush2.msra.mxu0 0.0
        %1432 = vmatprep.subr.mxu0 0.0
        %1433 = vmatpush2.msra.mxu0 0.0
        %1434 = vmatprep.subr.mxu0 0.0
        %1435 = vmatpush2.msra.mxu0 0.0
        %1436 = vmatprep.subr.mxu0 0.0
        %1437 = vmatpush2.msra.mxu0 0.0
        %1438 = vmatprep.subr.mxu0 0.0
        %1439 = vmatpush2.msra.mxu0 0.0
        %1440 = vmatprep.subr.mxu0 0.0
        %1441 = vmatpush2.msra.mxu0 0.0
        %1442 = vmatprep.subr.mxu0 0.0
        %1443 = vmatpush2.msra.mxu0 0.0
        %1444 = vmatprep.mubr.f32.mxu0 0.0
        %1445 = vmatmul.mubr.f32.gmra.mxu0 %v363
        %v1446 = vpop.f32.mrf.mxu0
        %v1447 = vadd.f32 0.0, %v1446
        %v1448 = vpop.f32.mrf.mxu0
        %v1449 = vadd.f32 0.0, %v1448
        %1450 = vmatprep.mubr.f32.mxu0 0.0
        %1451 = vmatmul.mubr.f32.gmra.mxu0 %v366
        %v1452 = vpop.f32.mrf.mxu0
        %v1453 = vadd.f32 0.0, %v1452
        %v1454 = vpop.f32.mrf.mxu0
        %v1455 = vadd.f32 0.0, %v1454
        %1456 = vmatprep.mubr.f32.mxu0 0.0
        %1457 = vmatmul.mubr.f32.gmra.mxu0 %v369
        %v1458 = vpop.f32.mrf.mxu0
        %v1459 = vadd.f32 0.0, %v1458
        %v1460 = vpop.f32.mrf.mxu0
        %v1461 = vadd.f32 0.0, %v1460
        %1462 = vmatprep.mubr.f32.mxu0 0.0
        %1463 = vmatmul.mubr.f32.gmra.mxu0 %v372
        %v1464 = vpop.f32.mrf.mxu0
        %v1465 = vadd.f32 0.0, %v1464
        %v1466 = vpop.f32.mrf.mxu0
        %v1467 = vadd.f32 0.0, %v1466
        %1468 = vmatprep.mubr.f32.mxu0 0.0
        %1469 = vmatmul.mubr.f32.gmra.mxu0 %v375
        %v1470 = vpop.f32.mrf.mxu0
        %v1471 = vadd.f32 0.0, %v1470
        %v1472 = vpop.f32.mrf.mxu0
        %v1473 = vadd.f32 0.0, %v1472
        %1474 = vmatprep.mubr.f32.mxu0 0.0
        %1475 = vmatmul.mubr.f32.gmra.mxu0 %v378
        %v1476 = vpop.f32.mrf.mxu0
        %v1477 = vadd.f32 0.0, %v1476
        %v1478 = vpop.f32.mrf.mxu0
        %v1479 = vadd.f32 0.0, %v1478
        %1480 = vmatprep.mubr.f32.mxu0 0.0
        %1481 = vmatmul.mubr.f32.gmra.mxu0 %v381
        %v1482 = vpop.f32.mrf.mxu0
        %v1483 = vadd.f32 0.0, %v1482
        %v1484 = vpop.f32.mrf.mxu0
        %v1485 = vadd.f32 0.0, %v1484
        %1486 = vmatprep.mubr.f32.mxu0 0.0
        %1487 = vmatmul.mubr.f32.gmra.mxu0 %v384
        %v1488 = vpop.f32.mrf.mxu0
        %v1489 = vadd.f32 0.0, %v1488
        %v1490 = vpop.f32.mrf.mxu0
        %v1491 = vadd.f32 0.0, %v1490
        %1492 = vmatprep.mubr.f32.mxu0 0.0
        %1493 = vmatmul.mubr.f32.gmra.mxu0 %v387
        %v1494 = vpop.f32.mrf.mxu0
        %v1495 = vadd.f32 0.0, %v1494
        %v1496 = vpop.f32.mrf.mxu0
        %v1497 = vadd.f32 0.0, %v1496
        %1498 = vmatprep.mubr.f32.mxu0 0.0
        %1499 = vmatmul.mubr.f32.gmra.mxu0 %v390
        %v1500 = vpop.f32.mrf.mxu0
        %v1501 = vadd.f32 0.0, %v1500
        %v1502 = vpop.f32.mrf.mxu0
        %v1503 = vadd.f32 0.0, %v1502
        %1504 = vmatprep.mubr.f32.mxu0 0.0
        %1505 = vmatmul.mubr.f32.gmra.mxu0 %v393
        %v1506 = vpop.f32.mrf.mxu0
        %v1507 = vadd.f32 0.0, %v1506
        %v1508 = vpop.f32.mrf.mxu0
        %v1509 = vadd.f32 0.0, %v1508
        %1510 = vmatprep.mubr.f32.mxu0 0.0
        %1511 = vmatmul.mubr.f32.gmra.mxu0 %v396
        %v1512 = vpop.f32.mrf.mxu0
        %v1513 = vadd.f32 0.0, %v1512
        %v1514 = vpop.f32.mrf.mxu0
        %v1515 = vadd.f32 0.0, %v1514
        %1516 = vmatprep.mubr.f32.mxu0 0.0
        %1517 = vmatmul.mubr.f32.gmra.mxu0 %v399
        %v1518 = vpop.f32.mrf.mxu0
        %v1519 = vadd.f32 0.0, %v1518
        %v1520 = vpop.f32.mrf.mxu0
        %v1521 = vadd.f32 0.0, %v1520
        %1522 = vmatprep.mubr.f32.mxu0 0.0
        %1523 = vmatmul.mubr.f32.gmra.mxu0 %v402
        %v1524 = vpop.f32.mrf.mxu0
        %v1525 = vadd.f32 0.0, %v1524
        %v1526 = vpop.f32.mrf.mxu0
        %v1527 = vadd.f32 0.0, %v1526
        %1528 = vmatprep.mubr.f32.mxu0 0.0
        %1529 = vmatmul.mubr.f32.gmra.mxu0 %v405
        %v1530 = vpop.f32.mrf.mxu0
        %v1531 = vadd.f32 0.0, %v1530
        %v1532 = vpop.f32.mrf.mxu0
        %v1533 = vadd.f32 0.0, %v1532
        %1534 = vmatprep.mubr.f32.mxu0 0.0
        %1535 = vmatmul.mubr.f32.gmra.mxu0 %v408
        %v1536 = vpop.f32.mrf.mxu0
        %v1537 = vadd.f32 0.0, %v1536
        %v1538 = vpop.f32.mrf.mxu0
        %v1539 = vadd.f32 0.0, %v1538
        %1540 = vmatprep.mubr.f32.mxu0 0.0
        %1541 = vmatmul.mubr.f32.gmra.mxu0 %v411
        %v1542 = vpop.f32.mrf.mxu0
        %v1543 = vadd.f32 0.0, %v1542
        %v1544 = vpop.f32.mrf.mxu0
        %v1545 = vadd.f32 0.0, %v1544
        %1546 = vmatprep.mubr.f32.mxu0 0.0
        %1547 = vmatmul.mubr.f32.gmra.mxu0 %v414
        %v1548 = vpop.f32.mrf.mxu0
        %v1549 = vadd.f32 0.0, %v1548
        %v1550 = vpop.f32.mrf.mxu0
        %v1551 = vadd.f32 0.0, %v1550
        %1552 = vmatprep.mubr.f32.mxu0 0.0
        %1553 = vmatmul.mubr.f32.gmra.mxu0 %v417
        %v1554 = vpop.f32.mrf.mxu0
        %v1555 = vadd.f32 0.0, %v1554
        %v1556 = vpop.f32.mrf.mxu0
        %v1557 = vadd.f32 0.0, %v1556
        %1558 = vmatprep.mubr.f32.mxu0 0.0
        %1559 = vmatmul.mubr.f32.gmra.mxu0 %v420
        %v1560 = vpop.f32.mrf.mxu0
        %v1561 = vadd.f32 0.0, %v1560
        %v1562 = vpop.f32.mrf.mxu0
        %v1563 = vadd.f32 0.0, %v1562
        %1564 = vmatprep.mubr.f32.mxu0 0.0
        %1565 = vmatmul.mubr.f32.gmra.mxu0 %v423
        %v1566 = vpop.f32.mrf.mxu0
        %v1567 = vadd.f32 0.0, %v1566
        %v1568 = vpop.f32.mrf.mxu0
        %v1569 = vadd.f32 0.0, %v1568
        %1570 = vmatprep.mubr.f32.mxu0 0.0
        %1571 = vmatmul.mubr.f32.gmra.mxu0 %v426
        %v1572 = vpop.f32.mrf.mxu0
        %v1573 = vadd.f32 0.0, %v1572
        %v1574 = vpop.f32.mrf.mxu0
        %v1575 = vadd.f32 0.0, %v1574
        %1576 = vmatprep.mubr.f32.mxu0 0.0
        %1577 = vmatmul.mubr.f32.gmra.mxu0 %v429
        %v1578 = vpop.f32.mrf.mxu0
        %v1579 = vadd.f32 0.0, %v1578
        %v1580 = vpop.f32.mrf.mxu0
        %v1581 = vadd.f32 0.0, %v1580
        %1582 = vmatprep.mubr.f32.mxu0 0.0
        %1583 = vmatmul.mubr.f32.gmra.mxu0 %v432
        %v1584 = vpop.f32.mrf.mxu0
        %v1585 = vadd.f32 0.0, %v1584
        %v1586 = vpop.f32.mrf.mxu0
        %v1587 = vadd.f32 0.0, %v1586
        %1588 = vmatprep.mubr.f32.mxu0 0.0
        %1589 = vmatmul.mubr.f32.gmra.mxu0 %v435
        %v1590 = vpop.f32.mrf.mxu0
        %v1591 = vadd.f32 0.0, %v1590
        %v1592 = vpop.f32.mrf.mxu0
        %v1593 = vadd.f32 0.0, %v1592
        %1594 = vmatprep.mubr.f32.mxu0 0.0
        %1595 = vmatmul.mubr.f32.gmra.mxu0 %v438
        %v1596 = vpop.f32.mrf.mxu0
        %v1597 = vadd.f32 0.0, %v1596
        %v1598 = vpop.f32.mrf.mxu0
        %v1599 = vadd.f32 0.0, %v1598
        %1600 = vmatprep.mubr.f32.mxu0 0.0
        %1601 = vmatmul.mubr.f32.gmra.mxu0 %v441
        %v1602 = vpop.f32.mrf.mxu0
        %v1603 = vadd.f32 0.0, %v1602
        %v1604 = vpop.f32.mrf.mxu0
        %v1605 = vadd.f32 0.0, %v1604
        %1606 = vmatprep.mubr.f32.mxu0 0.0
        %1607 = vmatmul.mubr.f32.gmra.mxu0 %v444
        %v1608 = vpop.f32.mrf.mxu0
        %v1609 = vadd.f32 0.0, %v1608
        %v1610 = vpop.f32.mrf.mxu0
        %v1611 = vadd.f32 0.0, %v1610
        %1612 = vmatprep.mubr.f32.mxu0 0.0
        %1613 = vmatmul.mubr.f32.gmra.mxu0 %v447
        %v1614 = vpop.f32.mrf.mxu0
        %v1615 = vadd.f32 0.0, %v1614
        %v1616 = vpop.f32.mrf.mxu0
        %v1617 = vadd.f32 0.0, %v1616
        %1618 = vmatprep.mubr.f32.mxu0 0.0
        %1619 = vmatmul.mubr.f32.gmra.mxu0 %v450
        %v1620 = vpop.f32.mrf.mxu0
        %v1621 = vadd.f32 0.0, %v1620
        %v1622 = vpop.f32.mrf.mxu0
        %v1623 = vadd.f32 0.0, %v1622
        %1624 = vmatprep.mubr.f32.mxu0 0.0
        %1625 = vmatmul.mubr.f32.gmra.mxu0 %v453
        %v1626 = vpop.f32.mrf.mxu0
        %v1627 = vadd.f32 0.0, %v1626
        %v1628 = vpop.f32.mrf.mxu0
        %v1629 = vadd.f32 0.0, %v1628
        %1630 = vmatprep.mubr.f32.mxu0 0.0
        %1631 = vmatmul.mubr.f32.gmra.mxu0 %v456
        %v1632 = vpop.f32.mrf.mxu0
        %v1633 = vadd.f32 0.0, %v1632
        %v1634 = vpop.f32.mrf.mxu0
        %v1635 = vadd.f32 0.0, %v1634
        %1636 = vmatprep.mubr.f32.mxu0 0.0
        %1637 = vmatmul.mubr.f32.gmra.mxu0 %v459
        %v1638 = vpop.f32.mrf.mxu0
        %v1639 = vadd.f32 0.0, %v1638
        %v1640 = vpop.f32.mrf.mxu0
        %v1641 = vadd.f32 0.0, %v1640
        %1642 = vmatprep.mubr.f32.mxu0 0.0
        %1643 = vmatmul.mubr.f32.gmra.mxu0 %v462
        %v1644 = vpop.f32.mrf.mxu0
        %v1645 = vadd.f32 0.0, %v1644
        %v1646 = vpop.f32.mrf.mxu0
        %v1647 = vadd.f32 0.0, %v1646
        %1648 = vmatprep.mubr.f32.mxu0 0.0
        %1649 = vmatmul.mubr.f32.gmra.mxu0 %v465
        %v1650 = vpop.f32.mrf.mxu0
        %v1651 = vadd.f32 0.0, %v1650
        %v1652 = vpop.f32.mrf.mxu0
        %v1653 = vadd.f32 0.0, %v1652
        %1654 = vmatprep.mubr.f32.mxu0 0.0
        %1655 = vmatmul.mubr.f32.gmra.mxu0 %v468
        %v1656 = vpop.f32.mrf.mxu0
        %v1657 = vadd.f32 0.0, %v1656
        %v1658 = vpop.f32.mrf.mxu0
        %v1659 = vadd.f32 0.0, %v1658
        %1660 = vmatprep.mubr.f32.mxu0 0.0
        %1661 = vmatmul.mubr.f32.gmra.mxu0 %v471
        %v1662 = vpop.f32.mrf.mxu0
        %v1663 = vadd.f32 0.0, %v1662
        %v1664 = vpop.f32.mrf.mxu0
        %v1665 = vadd.f32 0.0, %v1664
        %1666 = vmatprep.mubr.f32.mxu0 0.0
        %1667 = vmatmul.mubr.f32.gmra.mxu0 %v474
        %v1668 = vpop.f32.mrf.mxu0
        %v1669 = vadd.f32 0.0, %v1668
        %v1670 = vpop.f32.mrf.mxu0
        %v1671 = vadd.f32 0.0, %v1670
        %1672 = vdwg.mxu0
        %v1673 = vmul.f32 %v568, %v1154
        %v1674 = vmul.f32 %v570, %v1156
        %v1675 = vmul.f32 %v861, %v1447
        %v1676 = vmul.f32 %v863, %v1449
        %v1677 = vmul.f32 %v574, %v1160
        %v1678 = vmul.f32 %v576, %v1162
        %v1679 = vmul.f32 %v867, %v1453
        %v1680 = vmul.f32 %v869, %v1455
        %v1681 = vmul.f32 %v580, %v1166
        %v1682 = vmul.f32 %v582, %v1168
        %v1683 = vmul.f32 %v873, %v1459
        %v1684 = vmul.f32 %v875, %v1461
        %v1685 = vmul.f32 %v586, %v1172
        %v1686 = vmul.f32 %v588, %v1174
        %v1687 = vmul.f32 %v879, %v1465
        %v1688 = vmul.f32 %v881, %v1467
        %v1689 = vmul.f32 %v592, %v1178
        %v1690 = vmul.f32 %v594, %v1180
        %v1691 = vmul.f32 %v885, %v1471
        %v1692 = vmul.f32 %v887, %v1473
        %v1693 = vmul.f32 %v598, %v1184
        %v1694 = vmul.f32 %v600, %v1186
        %v1695 = vmul.f32 %v891, %v1477
        %v1696 = vmul.f32 %v893, %v1479
        %v1697 = vmul.f32 %v604, %v1190
        %v1698 = vmul.f32 %v606, %v1192
        %v1699 = vmul.f32 %v897, %v1483
        %v1700 = vmul.f32 %v899, %v1485
        %v1701 = vmul.f32 %v610, %v1196
        %v1702 = vmul.f32 %v612, %v1198
        %v1703 = vmul.f32 %v903, %v1489
        %v1704 = vmul.f32 %v905, %v1491
        %v1705 = vmul.f32 %v616, %v1202
        %v1706 = vmul.f32 %v618, %v1204
        %v1707 = vmul.f32 %v909, %v1495
        %v1708 = vmul.f32 %v911, %v1497
        %v1709 = vmul.f32 %v622, %v1208
        %v1710 = vmul.f32 %v624, %v1210
        %v1711 = vmul.f32 %v915, %v1501
        %v1712 = vmul.f32 %v917, %v1503
        %v1713 = vmul.f32 %v628, %v1214
        %v1714 = vmul.f32 %v630, %v1216
        %v1715 = vmul.f32 %v921, %v1507
        %v1716 = vmul.f32 %v923, %v1509
        %v1717 = vmul.f32 %v634, %v1220
        %v1718 = vmul.f32 %v636, %v1222
        %v1719 = vmul.f32 %v927, %v1513
        %v1720 = vmul.f32 %v929, %v1515
        %v1721 = vmul.f32 %v640, %v1226
        %v1722 = vmul.f32 %v642, %v1228
        %v1723 = vmul.f32 %v933, %v1519
        %v1724 = vmul.f32 %v935, %v1521
        %v1725 = vmul.f32 %v646, %v1232
        %v1726 = vmul.f32 %v648, %v1234
        %v1727 = vmul.f32 %v939, %v1525
        %v1728 = vmul.f32 %v941, %v1527
        %v1729 = vmul.f32 %v652, %v1238
        %v1730 = vmul.f32 %v654, %v1240
        %v1731 = vmul.f32 %v945, %v1531
        %v1732 = vmul.f32 %v947, %v1533
        %v1733 = vmul.f32 %v658, %v1244
        %v1734 = vmul.f32 %v660, %v1246
        %v1735 = vmul.f32 %v951, %v1537
        %v1736 = vmul.f32 %v953, %v1539
        %v1737 = vmul.f32 %v664, %v1250
        %v1738 = vmul.f32 %v666, %v1252
        %v1739 = vmul.f32 %v957, %v1543
        %v1740 = vmul.f32 %v959, %v1545
        %v1741 = vmul.f32 %v670, %v1256
        %v1742 = vmul.f32 %v672, %v1258
        %v1743 = vmul.f32 %v963, %v1549
        %v1744 = vmul.f32 %v965, %v1551
        %v1745 = vmul.f32 %v676, %v1262
        %v1746 = vmul.f32 %v678, %v1264
        %v1747 = vmul.f32 %v969, %v1555
        %v1748 = vmul.f32 %v971, %v1557
        %v1749 = vmul.f32 %v682, %v1268
        %v1750 = vmul.f32 %v684, %v1270
        %v1751 = vmul.f32 %v975, %v1561
        %v1752 = vmul.f32 %v977, %v1563
        %v1753 = vmul.f32 %v688, %v1274
        %v1754 = vmul.f32 %v690, %v1276
        %v1755 = vmul.f32 %v981, %v1567
        %v1756 = vmul.f32 %v983, %v1569
        %v1757 = vmul.f32 %v694, %v1280
        %v1758 = vmul.f32 %v696, %v1282
        %v1759 = vmul.f32 %v987, %v1573
        %v1760 = vmul.f32 %v989, %v1575
        %v1761 = vmul.f32 %v700, %v1286
        %v1762 = vmul.f32 %v702, %v1288
        %v1763 = vmul.f32 %v993, %v1579
        %v1764 = vmul.f32 %v995, %v1581
        %v1765 = vmul.f32 %v706, %v1292
        %v1766 = vmul.f32 %v708, %v1294
        %v1767 = vmul.f32 %v999, %v1585
        %v1768 = vmul.f32 %v1001, %v1587
        %v1769 = vmul.f32 %v712, %v1298
        %v1770 = vmul.f32 %v714, %v1300
        %v1771 = vmul.f32 %v1005, %v1591
        %v1772 = vmul.f32 %v1007, %v1593
        %v1773 = vmul.f32 %v718, %v1304
        %v1774 = vmul.f32 %v720, %v1306
        %v1775 = vmul.f32 %v1011, %v1597
        %v1776 = vmul.f32 %v1013, %v1599
        %v1777 = vmul.f32 %v724, %v1310
        %v1778 = vmul.f32 %v726, %v1312
        %v1779 = vmul.f32 %v1017, %v1603
        %v1780 = vmul.f32 %v1019, %v1605
        %v1781 = vmul.f32 %v730, %v1316
        %v1782 = vmul.f32 %v732, %v1318
        %v1783 = vmul.f32 %v1023, %v1609
        %v1784 = vmul.f32 %v1025, %v1611
        %v1785 = vmul.f32 %v736, %v1322
        %v1786 = vmul.f32 %v738, %v1324
        %v1787 = vmul.f32 %v1029, %v1615
        %v1788 = vmul.f32 %v1031, %v1617
        %v1789 = vmul.f32 %v742, %v1328
        %v1790 = vmul.f32 %v744, %v1330
        %v1791 = vmul.f32 %v1035, %v1621
        %v1792 = vmul.f32 %v1037, %v1623
        %v1793 = vmul.f32 %v748, %v1334
        %v1794 = vmul.f32 %v750, %v1336
        %v1795 = vmul.f32 %v1041, %v1627
        %v1796 = vmul.f32 %v1043, %v1629
        %v1797 = vmul.f32 %v754, %v1340
        %v1798 = vmul.f32 %v756, %v1342
        %v1799 = vmul.f32 %v1047, %v1633
        %v1800 = vmul.f32 %v1049, %v1635
        %v1801 = vmul.f32 %v760, %v1346
        %v1802 = vmul.f32 %v762, %v1348
        %v1803 = vmul.f32 %v1053, %v1639
        %v1804 = vmul.f32 %v1055, %v1641
        %v1805 = vmul.f32 %v766, %v1352
        %v1806 = vmul.f32 %v768, %v1354
        %v1807 = vmul.f32 %v1059, %v1645
        %v1808 = vmul.f32 %v1061, %v1647
        %v1809 = vmul.f32 %v772, %v1358
        %v1810 = vmul.f32 %v774, %v1360
        %v1811 = vmul.f32 %v1065, %v1651
        %v1812 = vmul.f32 %v1067, %v1653
        %v1813 = vmul.f32 %v778, %v1364
        %v1814 = vmul.f32 %v780, %v1366
        %v1815 = vmul.f32 %v1071, %v1657
        %v1816 = vmul.f32 %v1073, %v1659
        %v1817 = vmul.f32 %v784, %v1370
        %v1818 = vmul.f32 %v786, %v1372
        %v1819 = vmul.f32 %v1077, %v1663
        %v1820 = vmul.f32 %v1079, %v1665
        %v1821 = vmul.f32 %v790, %v1376
        %v1822 = vmul.f32 %v792, %v1378
        %v1823 = vmul.f32 %v1083, %v1669
        %v1824 = vmul.f32 %v1085, %v1671
        %v1825 = vld [vmem:[#allocation2] sm:$0xff]
        %v1826 = vld [vmem:[#allocation2 + $0x8] sm:$0xff]
        %v1827 = vld [vmem:[#allocation2 + $0x10] sm:$0xff]
        %v1828 = vld [vmem:[#allocation2 + $0x18] sm:$0xff]
        %v1829 = vld [vmem:[#allocation2 + $0x20] sm:$0xff]
        %v1830 = vld [vmem:[#allocation2 + $0x28] sm:$0xff]
        %v1831 = vld [vmem:[#allocation2 + $0x30] sm:$0xff]
        %v1832 = vld [vmem:[#allocation2 + $0x38] sm:$0xff]
        %v1833 = vld [vmem:[#allocation2 + $0x40] sm:$0xff]
        %v1834 = vld [vmem:[#allocation2 + $0x48] sm:$0xff]
        %v1835 = vld [vmem:[#allocation2 + $0x50] sm:$0xff]
        %v1836 = vld [vmem:[#allocation2 + $0x58] sm:$0xff]
        %v1837 = vld [vmem:[#allocation2 + $0x60] sm:$0xff]
        %v1838 = vld [vmem:[#allocation2 + $0x68] sm:$0xff]
        %v1839 = vld [vmem:[#allocation2 + $0x70] sm:$0xff]
        %v1840 = vld [vmem:[#allocation2 + $0x78] sm:$0xff]
        %v1841 = vld [vmem:[#allocation2 + $0x80] sm:$0xff]
        %v1842 = vld [vmem:[#allocation2 + $0x88] sm:$0xff]
        %v1843 = vld [vmem:[#allocation2 + $0x90] sm:$0xff]
        %v1844 = vld [vmem:[#allocation2 + $0x98] sm:$0xff]
        %v1845 = vld [vmem:[#allocation2 + $0xa0] sm:$0xff]
        %v1846 = vld [vmem:[#allocation2 + $0xa8] sm:$0xff]
        %v1847 = vld [vmem:[#allocation2 + $0xb0] sm:$0xff]
        %v1848 = vld [vmem:[#allocation2 + $0xb8] sm:$0xff]
        %v1849 = vld [vmem:[#allocation2 + $0xc0] sm:$0xff]
        %v1850 = vld [vmem:[#allocation2 + $0xc8] sm:$0xff]
        %v1851 = vld [vmem:[#allocation2 + $0xd0] sm:$0xff]
        %v1852 = vld [vmem:[#allocation2 + $0xd8] sm:$0xff]
        %v1853 = vld [vmem:[#allocation2 + $0xe0] sm:$0xff]
        %v1854 = vld [vmem:[#allocation2 + $0xe8] sm:$0xff]
        %v1855 = vld [vmem:[#allocation2 + $0xf0] sm:$0xff]
        %v1856 = vld [vmem:[#allocation2 + $0xf8] sm:$0xff]
        %v1857 = vld [vmem:[#allocation2 + $0x100] sm:$0xff]
        %v1858 = vld [vmem:[#allocation2 + $0x108] sm:$0xff]
        %v1859 = vld [vmem:[#allocation2 + $0x110] sm:$0xff]
        %v1860 = vld [vmem:[#allocation2 + $0x118] sm:$0xff]
        %v1861 = vld [vmem:[#allocation2 + $0x120] sm:$0xff]
        %v1862 = vld [vmem:[#allocation2 + $0x128] sm:$0xff]
        %v1863 = vld [vmem:[#allocation2 + $0x130] sm:$0xff]
        %v1864 = vld [vmem:[#allocation2 + $0x138] sm:$0xff]
        %v1865 = vld [vmem:[#allocation2 + $0x140] sm:$0xff]
        %v1866 = vld [vmem:[#allocation2 + $0x148] sm:$0xff]
        %v1867 = vld [vmem:[#allocation2 + $0x150] sm:$0xff]
        %v1868 = vld [vmem:[#allocation2 + $0x158] sm:$0xff]
        %v1869 = vld [vmem:[#allocation2 + $0x160] sm:$0xff]
        %v1870 = vld [vmem:[#allocation2 + $0x168] sm:$0xff]
        %v1871 = vld [vmem:[#allocation2 + $0x170] sm:$0xff]
        %v1872 = vld [vmem:[#allocation2 + $0x178] sm:$0xff]
        %v1873 = vld [vmem:[#allocation2 + $0x180] sm:$0xff]
        %v1874 = vld [vmem:[#allocation2 + $0x188] sm:$0xff]
        %v1875 = vld [vmem:[#allocation2 + $0x190] sm:$0xff]
        %v1876 = vld [vmem:[#allocation2 + $0x198] sm:$0xff]
        %v1877 = vld [vmem:[#allocation2 + $0x1a0] sm:$0xff]
        %v1878 = vld [vmem:[#allocation2 + $0x1a8] sm:$0xff]
        %v1879 = vld [vmem:[#allocation2 + $0x1b0] sm:$0xff]
        %v1880 = vld [vmem:[#allocation2 + $0x1b8] sm:$0xff]
        %v1881 = vld [vmem:[#allocation2 + $0x1c0] sm:$0xff]
        %v1882 = vld [vmem:[#allocation2 + $0x1c8] sm:$0xff]
        %v1883 = vld [vmem:[#allocation2 + $0x1d0] sm:$0xff]
        %v1884 = vld [vmem:[#allocation2 + $0x1d8] sm:$0xff]
        %v1885 = vld [vmem:[#allocation2 + $0x1e0] sm:$0xff]
        %v1886 = vld [vmem:[#allocation2 + $0x1e8] sm:$0xff]
        %v1887 = vld [vmem:[#allocation2 + $0x1f0] sm:$0xff]
        %v1888 = vld [vmem:[#allocation2 + $0x1f8] sm:$0xff]
        %1889 = vmatprep.subr.mxu0 0.0
        %1890 = vmatpush1.msra.mxu0 %v1840
        %1891 = vmatprep.subr.mxu0 0.0
        %1892 = vmatpush1.msra.mxu0 %v1839
        %1893 = vmatprep.subr.mxu0 0.0
        %1894 = vmatpush1.msra.mxu0 %v1838
        %1895 = vmatprep.subr.mxu0 0.0
        %1896 = vmatpush1.msra.mxu0 %v1837
        %1897 = vmatprep.subr.mxu0 0.0
        %1898 = vmatpush1.msra.mxu0 %v1836
        %1899 = vmatprep.subr.mxu0 0.0
        %1900 = vmatpush1.msra.mxu0 %v1835
        %1901 = vmatprep.subr.mxu0 0.0
        %1902 = vmatpush1.msra.mxu0 %v1834
        %1903 = vmatprep.subr.mxu0 0.0
        %1904 = vmatpush1.msra.mxu0 %v1833
        %1905 = vmatprep.subr.mxu0 0.0
        %1906 = vmatpush1.msra.mxu0 %v1832
        %1907 = vmatprep.subr.mxu0 0.0
        %1908 = vmatpush1.msra.mxu0 %v1831
        %1909 = vmatprep.subr.mxu0 0.0
        %1910 = vmatpush1.msra.mxu0 %v1830
        %1911 = vmatprep.subr.mxu0 0.0
        %1912 = vmatpush1.msra.mxu0 %v1829
        %1913 = vmatprep.subr.mxu0 0.0
        %1914 = vmatpush1.msra.mxu0 %v1828
        %1915 = vmatprep.subr.mxu0 0.0
        %1916 = vmatpush1.msra.mxu0 %v1827
        %1917 = vmatprep.subr.mxu0 0.0
        %1918 = vmatpush1.msra.mxu0 %v1826
        %1919 = vmatprep.subr.mxu0 0.0
        %1920 = vmatpush1.msra.mxu0 %v1825
        %1921 = vmatprep.subr.mxu0 0.0
        %1922 = vmatpush2.msra.mxu0 %v1856
        %1923 = vmatprep.subr.mxu0 0.0
        %1924 = vmatpush2.msra.mxu0 %v1855
        %1925 = vmatprep.subr.mxu0 0.0
        %1926 = vmatpush2.msra.mxu0 %v1854
        %1927 = vmatprep.subr.mxu0 0.0
        %1928 = vmatpush2.msra.mxu0 %v1853
        %1929 = vmatprep.subr.mxu0 0.0
        %1930 = vmatpush2.msra.mxu0 %v1852
        %1931 = vmatprep.subr.mxu0 0.0
        %1932 = vmatpush2.msra.mxu0 %v1851
        %1933 = vmatprep.subr.mxu0 0.0
        %1934 = vmatpush2.msra.mxu0 %v1850
        %1935 = vmatprep.subr.mxu0 0.0
        %1936 = vmatpush2.msra.mxu0 %v1849
        %1937 = vmatprep.subr.mxu0 0.0
        %1938 = vmatpush2.msra.mxu0 %v1848
        %1939 = vmatprep.subr.mxu0 0.0
        %1940 = vmatpush2.msra.mxu0 %v1847
        %1941 = vmatprep.subr.mxu0 0.0
        %1942 = vmatpush2.msra.mxu0 %v1846
        %1943 = vmatprep.subr.mxu0 0.0
        %1944 = vmatpush2.msra.mxu0 %v1845
        %1945 = vmatprep.subr.mxu0 0.0
        %1946 = vmatpush2.msra.mxu0 %v1844
        %1947 = vmatprep.subr.mxu0 0.0
        %1948 = vmatpush2.msra.mxu0 %v1843
        %1949 = vmatprep.subr.mxu0 0.0
        %1950 = vmatpush2.msra.mxu0 %v1842
        %1951 = vmatprep.subr.mxu0 0.0
        %1952 = vmatpush2.msra.mxu0 %v1841
        %1953 = vmatprep.mubr.f32.mxu0 %v1674
        %1954 = vmatmul.mubr.f32.gmra.mxu0 %v1673
        %v1955 = vpop.f32.mrf.mxu0
        %v1956 = vadd.f32 0.0, %v1955
        %v1957 = vpop.f32.mrf.mxu0
        %1958 = vmatprep.mubr.f32.mxu0 %v1678
        %1959 = vmatmul.mubr.f32.gmra.mxu0 %v1677
        %v1960 = vpop.f32.mrf.mxu0
        %v1961 = vadd.f32 0.0, %v1960
        %v1962 = vpop.f32.mrf.mxu0
        %1963 = vmatprep.mubr.f32.mxu0 %v1682
        %1964 = vmatmul.mubr.f32.gmra.mxu0 %v1681
        %v1965 = vpop.f32.mrf.mxu0
        %v1966 = vadd.f32 0.0, %v1965
        %v1967 = vpop.f32.mrf.mxu0
        %1968 = vmatprep.mubr.f32.mxu0 %v1686
        %1969 = vmatmul.mubr.f32.gmra.mxu0 %v1685
        %v1970 = vpop.f32.mrf.mxu0
        %v1971 = vadd.f32 0.0, %v1970
        %v1972 = vpop.f32.mrf.mxu0
        %1973 = vmatprep.mubr.f32.mxu0 %v1690
        %1974 = vmatmul.mubr.f32.gmra.mxu0 %v1689
        %v1975 = vpop.f32.mrf.mxu0
        %v1976 = vadd.f32 0.0, %v1975
        %v1977 = vpop.f32.mrf.mxu0
        %1978 = vmatprep.mubr.f32.mxu0 %v1694
        %1979 = vmatmul.mubr.f32.gmra.mxu0 %v1693
        %v1980 = vpop.f32.mrf.mxu0
        %v1981 = vadd.f32 0.0, %v1980
        %v1982 = vpop.f32.mrf.mxu0
        %1983 = vmatprep.mubr.f32.mxu0 %v1698
        %1984 = vmatmul.mubr.f32.gmra.mxu0 %v1697
        %v1985 = vpop.f32.mrf.mxu0
        %v1986 = vadd.f32 0.0, %v1985
        %v1987 = vpop.f32.mrf.mxu0
        %1988 = vmatprep.mubr.f32.mxu0 %v1702
        %1989 = vmatmul.mubr.f32.gmra.mxu0 %v1701
        %v1990 = vpop.f32.mrf.mxu0
        %v1991 = vadd.f32 0.0, %v1990
        %v1992 = vpop.f32.mrf.mxu0
        %1993 = vmatprep.mubr.f32.mxu0 %v1706
        %1994 = vmatmul.mubr.f32.gmra.mxu0 %v1705
        %v1995 = vpop.f32.mrf.mxu0
        %v1996 = vadd.f32 0.0, %v1995
        %v1997 = vpop.f32.mrf.mxu0
        %1998 = vmatprep.mubr.f32.mxu0 %v1710
        %1999 = vmatmul.mubr.f32.gmra.mxu0 %v1709
        %v2000 = vpop.f32.mrf.mxu0
        %v2001 = vadd.f32 0.0, %v2000
        %v2002 = vpop.f32.mrf.mxu0
        %2003 = vmatprep.mubr.f32.mxu0 %v1714
        %2004 = vmatmul.mubr.f32.gmra.mxu0 %v1713
        %v2005 = vpop.f32.mrf.mxu0
        %v2006 = vadd.f32 0.0, %v2005
        %v2007 = vpop.f32.mrf.mxu0
        %2008 = vmatprep.mubr.f32.mxu0 %v1718
        %2009 = vmatmul.mubr.f32.gmra.mxu0 %v1717
        %v2010 = vpop.f32.mrf.mxu0
        %v2011 = vadd.f32 0.0, %v2010
        %v2012 = vpop.f32.mrf.mxu0
        %2013 = vmatprep.mubr.f32.mxu0 %v1722
        %2014 = vmatmul.mubr.f32.gmra.mxu0 %v1721
        %v2015 = vpop.f32.mrf.mxu0
        %v2016 = vadd.f32 0.0, %v2015
        %v2017 = vpop.f32.mrf.mxu0
        %2018 = vmatprep.mubr.f32.mxu0 %v1726
        %2019 = vmatmul.mubr.f32.gmra.mxu0 %v1725
        %v2020 = vpop.f32.mrf.mxu0
        %v2021 = vadd.f32 0.0, %v2020
        %v2022 = vpop.f32.mrf.mxu0
        %2023 = vmatprep.mubr.f32.mxu0 %v1730
        %2024 = vmatmul.mubr.f32.gmra.mxu0 %v1729
        %v2025 = vpop.f32.mrf.mxu0
        %v2026 = vadd.f32 0.0, %v2025
        %v2027 = vpop.f32.mrf.mxu0
        %2028 = vmatprep.mubr.f32.mxu0 %v1734
        %2029 = vmatmul.mubr.f32.gmra.mxu0 %v1733
        %v2030 = vpop.f32.mrf.mxu0
        %v2031 = vadd.f32 0.0, %v2030
        %v2032 = vpop.f32.mrf.mxu0
        %2033 = vmatprep.mubr.f32.mxu0 %v1738
        %2034 = vmatmul.mubr.f32.gmra.mxu0 %v1737
        %v2035 = vpop.f32.mrf.mxu0
        %v2036 = vadd.f32 0.0, %v2035
        %v2037 = vpop.f32.mrf.mxu0
        %2038 = vmatprep.mubr.f32.mxu0 %v1742
        %2039 = vmatmul.mubr.f32.gmra.mxu0 %v1741
        %v2040 = vpop.f32.mrf.mxu0
        %v2041 = vadd.f32 0.0, %v2040
        %v2042 = vpop.f32.mrf.mxu0
        %2043 = vmatprep.mubr.f32.mxu0 %v1746
        %2044 = vmatmul.mubr.f32.gmra.mxu0 %v1745
        %v2045 = vpop.f32.mrf.mxu0
        %v2046 = vadd.f32 0.0, %v2045
        %v2047 = vpop.f32.mrf.mxu0
        %2048 = vmatprep.mubr.f32.mxu0 %v1750
        %2049 = vmatmul.mubr.f32.gmra.mxu0 %v1749
        %v2050 = vpop.f32.mrf.mxu0
        %v2051 = vadd.f32 0.0, %v2050
        %v2052 = vpop.f32.mrf.mxu0
        %2053 = vmatprep.mubr.f32.mxu0 %v1754
        %2054 = vmatmul.mubr.f32.gmra.mxu0 %v1753
        %v2055 = vpop.f32.mrf.mxu0
        %v2056 = vadd.f32 0.0, %v2055
        %v2057 = vpop.f32.mrf.mxu0
        %2058 = vmatprep.mubr.f32.mxu0 %v1758
        %2059 = vmatmul.mubr.f32.gmra.mxu0 %v1757
        %v2060 = vpop.f32.mrf.mxu0
        %v2061 = vadd.f32 0.0, %v2060
        %v2062 = vpop.f32.mrf.mxu0
        %2063 = vmatprep.mubr.f32.mxu0 %v1762
        %2064 = vmatmul.mubr.f32.gmra.mxu0 %v1761
        %v2065 = vpop.f32.mrf.mxu0
        %v2066 = vadd.f32 0.0, %v2065
        %v2067 = vpop.f32.mrf.mxu0
        %2068 = vmatprep.mubr.f32.mxu0 %v1766
        %2069 = vmatmul.mubr.f32.gmra.mxu0 %v1765
        %v2070 = vpop.f32.mrf.mxu0
        %v2071 = vadd.f32 0.0, %v2070
        %v2072 = vpop.f32.mrf.mxu0
        %2073 = vmatprep.mubr.f32.mxu0 %v1770
        %2074 = vmatmul.mubr.f32.gmra.mxu0 %v1769
        %v2075 = vpop.f32.mrf.mxu0
        %v2076 = vadd.f32 0.0, %v2075
        %v2077 = vpop.f32.mrf.mxu0
        %2078 = vmatprep.mubr.f32.mxu0 %v1774
        %2079 = vmatmul.mubr.f32.gmra.mxu0 %v1773
        %v2080 = vpop.f32.mrf.mxu0
        %v2081 = vadd.f32 0.0, %v2080
        %v2082 = vpop.f32.mrf.mxu0
        %2083 = vmatprep.mubr.f32.mxu0 %v1778
        %2084 = vmatmul.mubr.f32.gmra.mxu0 %v1777
        %v2085 = vpop.f32.mrf.mxu0
        %v2086 = vadd.f32 0.0, %v2085
        %v2087 = vpop.f32.mrf.mxu0
        %2088 = vmatprep.mubr.f32.mxu0 %v1782
        %2089 = vmatmul.mubr.f32.gmra.mxu0 %v1781
        %v2090 = vpop.f32.mrf.mxu0
        %v2091 = vadd.f32 0.0, %v2090
        %v2092 = vpop.f32.mrf.mxu0
        %2093 = vmatprep.mubr.f32.mxu0 %v1786
        %2094 = vmatmul.mubr.f32.gmra.mxu0 %v1785
        %v2095 = vpop.f32.mrf.mxu0
        %v2096 = vadd.f32 0.0, %v2095
        %v2097 = vpop.f32.mrf.mxu0
        %2098 = vmatprep.mubr.f32.mxu0 %v1790
        %2099 = vmatmul.mubr.f32.gmra.mxu0 %v1789
        %v2100 = vpop.f32.mrf.mxu0
        %v2101 = vadd.f32 0.0, %v2100
        %v2102 = vpop.f32.mrf.mxu0
        %2103 = vmatprep.mubr.f32.mxu0 %v1794
        %2104 = vmatmul.mubr.f32.gmra.mxu0 %v1793
        %v2105 = vpop.f32.mrf.mxu0
        %v2106 = vadd.f32 0.0, %v2105
        %v2107 = vpop.f32.mrf.mxu0
        %2108 = vmatprep.mubr.f32.mxu0 %v1798
        %2109 = vmatmul.mubr.f32.gmra.mxu0 %v1797
        %v2110 = vpop.f32.mrf.mxu0
        %v2111 = vadd.f32 0.0, %v2110
        %v2112 = vpop.f32.mrf.mxu0
        %2113 = vmatprep.mubr.f32.mxu0 %v1802
        %2114 = vmatmul.mubr.f32.gmra.mxu0 %v1801
        %v2115 = vpop.f32.mrf.mxu0
        %v2116 = vadd.f32 0.0, %v2115
        %v2117 = vpop.f32.mrf.mxu0
        %2118 = vmatprep.mubr.f32.mxu0 %v1806
        %2119 = vmatmul.mubr.f32.gmra.mxu0 %v1805
        %v2120 = vpop.f32.mrf.mxu0
        %v2121 = vadd.f32 0.0, %v2120
        %v2122 = vpop.f32.mrf.mxu0
        %2123 = vmatprep.mubr.f32.mxu0 %v1810
        %2124 = vmatmul.mubr.f32.gmra.mxu0 %v1809
        %v2125 = vpop.f32.mrf.mxu0
        %v2126 = vadd.f32 0.0, %v2125
        %v2127 = vpop.f32.mrf.mxu0
        %2128 = vmatprep.mubr.f32.mxu0 %v1814
        %2129 = vmatmul.mubr.f32.gmra.mxu0 %v1813
        %v2130 = vpop.f32.mrf.mxu0
        %v2131 = vadd.f32 0.0, %v2130
        %v2132 = vpop.f32.mrf.mxu0
        %2133 = vmatprep.mubr.f32.mxu0 %v1818
        %2134 = vmatmul.mubr.f32.gmra.mxu0 %v1817
        %v2135 = vpop.f32.mrf.mxu0
        %v2136 = vadd.f32 0.0, %v2135
        %v2137 = vpop.f32.mrf.mxu0
        %2138 = vmatprep.mubr.f32.mxu0 %v1822
        %2139 = vmatmul.mubr.f32.gmra.mxu0 %v1821
        %v2140 = vpop.f32.mrf.mxu0
        %v2141 = vadd.f32 0.0, %v2140
        %v2142 = vpop.f32.mrf.mxu0
        %2143 = vdwg.mxu0
        %2144 = vmatprep.subr.mxu0 0.0
        %2145 = vmatpush1.msra.mxu0 %v1872
        %2146 = vmatprep.subr.mxu0 0.0
        %2147 = vmatpush1.msra.mxu0 %v1871
        %2148 = vmatprep.subr.mxu0 0.0
        %2149 = vmatpush1.msra.mxu0 %v1870
        %2150 = vmatprep.subr.mxu0 0.0
        %2151 = vmatpush1.msra.mxu0 %v1869
        %2152 = vmatprep.subr.mxu0 0.0
        %2153 = vmatpush1.msra.mxu0 %v1868
        %2154 = vmatprep.subr.mxu0 0.0
        %2155 = vmatpush1.msra.mxu0 %v1867
        %2156 = vmatprep.subr.mxu0 0.0
        %2157 = vmatpush1.msra.mxu0 %v1866
        %2158 = vmatprep.subr.mxu0 0.0
        %2159 = vmatpush1.msra.mxu0 %v1865
        %2160 = vmatprep.subr.mxu0 0.0
        %2161 = vmatpush1.msra.mxu0 %v1864
        %2162 = vmatprep.subr.mxu0 0.0
        %2163 = vmatpush1.msra.mxu0 %v1863
        %2164 = vmatprep.subr.mxu0 0.0
        %2165 = vmatpush1.msra.mxu0 %v1862
        %2166 = vmatprep.subr.mxu0 0.0
        %2167 = vmatpush1.msra.mxu0 %v1861
        %2168 = vmatprep.subr.mxu0 0.0
        %2169 = vmatpush1.msra.mxu0 %v1860
        %2170 = vmatprep.subr.mxu0 0.0
        %2171 = vmatpush1.msra.mxu0 %v1859
        %2172 = vmatprep.subr.mxu0 0.0
        %2173 = vmatpush1.msra.mxu0 %v1858
        %2174 = vmatprep.subr.mxu0 0.0
        %2175 = vmatpush1.msra.mxu0 %v1857
        %2176 = vmatprep.subr.mxu0 0.0
        %2177 = vmatpush2.msra.mxu0 %v1888
        %2178 = vmatprep.subr.mxu0 0.0
        %2179 = vmatpush2.msra.mxu0 %v1887
        %2180 = vmatprep.subr.mxu0 0.0
        %2181 = vmatpush2.msra.mxu0 %v1886
        %2182 = vmatprep.subr.mxu0 0.0
        %2183 = vmatpush2.msra.mxu0 %v1885
        %2184 = vmatprep.subr.mxu0 0.0
        %2185 = vmatpush2.msra.mxu0 %v1884
        %2186 = vmatprep.subr.mxu0 0.0
        %2187 = vmatpush2.msra.mxu0 %v1883
        %2188 = vmatprep.subr.mxu0 0.0
        %2189 = vmatpush2.msra.mxu0 %v1882
        %2190 = vmatprep.subr.mxu0 0.0
        %2191 = vmatpush2.msra.mxu0 %v1881
        %2192 = vmatprep.subr.mxu0 0.0
        %2193 = vmatpush2.msra.mxu0 %v1880
        %2194 = vmatprep.subr.mxu0 0.0
        %2195 = vmatpush2.msra.mxu0 %v1879
        %2196 = vmatprep.subr.mxu0 0.0
        %2197 = vmatpush2.msra.mxu0 %v1878
        %2198 = vmatprep.subr.mxu0 0.0
        %2199 = vmatpush2.msra.mxu0 %v1877
        %2200 = vmatprep.subr.mxu0 0.0
        %2201 = vmatpush2.msra.mxu0 %v1876
        %2202 = vmatprep.subr.mxu0 0.0
        %2203 = vmatpush2.msra.mxu0 %v1875
        %2204 = vmatprep.subr.mxu0 0.0
        %2205 = vmatpush2.msra.mxu0 %v1874
        %2206 = vmatprep.subr.mxu0 0.0
        %2207 = vmatpush2.msra.mxu0 %v1873
        %2208 = vmatprep.mubr.f32.mxu0 %v1676
        %2209 = vmatmul.mubr.f32.gmra.mxu0 %v1675
        %v2210 = vpop.f32.mrf.mxu0
        %v2211 = vadd.f32 %v1956, %v2210
        %v2212 = vpop.f32.mrf.mxu0
        %2213 = vmatprep.mubr.f32.mxu0 %v1680
        %2214 = vmatmul.mubr.f32.gmra.mxu0 %v1679
        %v2215 = vpop.f32.mrf.mxu0
        %v2216 = vadd.f32 %v1961, %v2215
        %v2217 = vpop.f32.mrf.mxu0
        %2218 = vmatprep.mubr.f32.mxu0 %v1684
        %2219 = vmatmul.mubr.f32.gmra.mxu0 %v1683
        %v2220 = vpop.f32.mrf.mxu0
        %v2221 = vadd.f32 %v1966, %v2220
        %v2222 = vpop.f32.mrf.mxu0
        %2223 = vmatprep.mubr.f32.mxu0 %v1688
        %2224 = vmatmul.mubr.f32.gmra.mxu0 %v1687
        %v2225 = vpop.f32.mrf.mxu0
        %v2226 = vadd.f32 %v1971, %v2225
        %v2227 = vpop.f32.mrf.mxu0
        %2228 = vmatprep.mubr.f32.mxu0 %v1692
        %2229 = vmatmul.mubr.f32.gmra.mxu0 %v1691
        %v2230 = vpop.f32.mrf.mxu0
        %v2231 = vadd.f32 %v1976, %v2230
        %v2232 = vpop.f32.mrf.mxu0
        %2233 = vmatprep.mubr.f32.mxu0 %v1696
        %2234 = vmatmul.mubr.f32.gmra.mxu0 %v1695
        %v2235 = vpop.f32.mrf.mxu0
        %v2236 = vadd.f32 %v1981, %v2235
        %v2237 = vpop.f32.mrf.mxu0
        %2238 = vmatprep.mubr.f32.mxu0 %v1700
        %2239 = vmatmul.mubr.f32.gmra.mxu0 %v1699
        %v2240 = vpop.f32.mrf.mxu0
        %v2241 = vadd.f32 %v1986, %v2240
        %v2242 = vpop.f32.mrf.mxu0
        %2243 = vmatprep.mubr.f32.mxu0 %v1704
        %2244 = vmatmul.mubr.f32.gmra.mxu0 %v1703
        %v2245 = vpop.f32.mrf.mxu0
        %v2246 = vadd.f32 %v1991, %v2245
        %v2247 = vpop.f32.mrf.mxu0
        %2248 = vmatprep.mubr.f32.mxu0 %v1708
        %2249 = vmatmul.mubr.f32.gmra.mxu0 %v1707
        %v2250 = vpop.f32.mrf.mxu0
        %v2251 = vadd.f32 %v1996, %v2250
        %v2252 = vpop.f32.mrf.mxu0
        %2253 = vmatprep.mubr.f32.mxu0 %v1712
        %2254 = vmatmul.mubr.f32.gmra.mxu0 %v1711
        %v2255 = vpop.f32.mrf.mxu0
        %v2256 = vadd.f32 %v2001, %v2255
        %v2257 = vpop.f32.mrf.mxu0
        %2258 = vmatprep.mubr.f32.mxu0 %v1716
        %2259 = vmatmul.mubr.f32.gmra.mxu0 %v1715
        %v2260 = vpop.f32.mrf.mxu0
        %v2261 = vadd.f32 %v2006, %v2260
        %v2262 = vpop.f32.mrf.mxu0
        %2263 = vmatprep.mubr.f32.mxu0 %v1720
        %2264 = vmatmul.mubr.f32.gmra.mxu0 %v1719
        %v2265 = vpop.f32.mrf.mxu0
        %v2266 = vadd.f32 %v2011, %v2265
        %v2267 = vpop.f32.mrf.mxu0
        %2268 = vmatprep.mubr.f32.mxu0 %v1724
        %2269 = vmatmul.mubr.f32.gmra.mxu0 %v1723
        %v2270 = vpop.f32.mrf.mxu0
        %v2271 = vadd.f32 %v2016, %v2270
        %v2272 = vpop.f32.mrf.mxu0
        %2273 = vmatprep.mubr.f32.mxu0 %v1728
        %2274 = vmatmul.mubr.f32.gmra.mxu0 %v1727
        %v2275 = vpop.f32.mrf.mxu0
        %v2276 = vadd.f32 %v2021, %v2275
        %v2277 = vpop.f32.mrf.mxu0
        %2278 = vmatprep.mubr.f32.mxu0 %v1732
        %2279 = vmatmul.mubr.f32.gmra.mxu0 %v1731
        %v2280 = vpop.f32.mrf.mxu0
        %v2281 = vadd.f32 %v2026, %v2280
        %v2282 = vpop.f32.mrf.mxu0
        %2283 = vmatprep.mubr.f32.mxu0 %v1736
        %2284 = vmatmul.mubr.f32.gmra.mxu0 %v1735
        %v2285 = vpop.f32.mrf.mxu0
        %v2286 = vadd.f32 %v2031, %v2285
        %v2287 = vpop.f32.mrf.mxu0
        %2288 = vmatprep.mubr.f32.mxu0 %v1740
        %2289 = vmatmul.mubr.f32.gmra.mxu0 %v1739
        %v2290 = vpop.f32.mrf.mxu0
        %v2291 = vadd.f32 %v2036, %v2290
        %v2292 = vpop.f32.mrf.mxu0
        %2293 = vmatprep.mubr.f32.mxu0 %v1744
        %2294 = vmatmul.mubr.f32.gmra.mxu0 %v1743
        %v2295 = vpop.f32.mrf.mxu0
        %v2296 = vadd.f32 %v2041, %v2295
        %v2297 = vpop.f32.mrf.mxu0
        %2298 = vmatprep.mubr.f32.mxu0 %v1748
        %2299 = vmatmul.mubr.f32.gmra.mxu0 %v1747
        %v2300 = vpop.f32.mrf.mxu0
        %v2301 = vadd.f32 %v2046, %v2300
        %v2302 = vpop.f32.mrf.mxu0
        %2303 = vmatprep.mubr.f32.mxu0 %v1752
        %2304 = vmatmul.mubr.f32.gmra.mxu0 %v1751
        %v2305 = vpop.f32.mrf.mxu0
        %v2306 = vadd.f32 %v2051, %v2305
        %v2307 = vpop.f32.mrf.mxu0
        %2308 = vmatprep.mubr.f32.mxu0 %v1756
        %2309 = vmatmul.mubr.f32.gmra.mxu0 %v1755
        %v2310 = vpop.f32.mrf.mxu0
        %v2311 = vadd.f32 %v2056, %v2310
        %v2312 = vpop.f32.mrf.mxu0
        %2313 = vmatprep.mubr.f32.mxu0 %v1760
        %2314 = vmatmul.mubr.f32.gmra.mxu0 %v1759
        %v2315 = vpop.f32.mrf.mxu0
        %v2316 = vadd.f32 %v2061, %v2315
        %v2317 = vpop.f32.mrf.mxu0
        %2318 = vmatprep.mubr.f32.mxu0 %v1764
        %2319 = vmatmul.mubr.f32.gmra.mxu0 %v1763
        %v2320 = vpop.f32.mrf.mxu0
        %v2321 = vadd.f32 %v2066, %v2320
        %v2322 = vpop.f32.mrf.mxu0
        %2323 = vmatprep.mubr.f32.mxu0 %v1768
        %2324 = vmatmul.mubr.f32.gmra.mxu0 %v1767
        %v2325 = vpop.f32.mrf.mxu0
        %v2326 = vadd.f32 %v2071, %v2325
        %v2327 = vpop.f32.mrf.mxu0
        %2328 = vmatprep.mubr.f32.mxu0 %v1772
        %2329 = vmatmul.mubr.f32.gmra.mxu0 %v1771
        %v2330 = vpop.f32.mrf.mxu0
        %v2331 = vadd.f32 %v2076, %v2330
        %v2332 = vpop.f32.mrf.mxu0
        %2333 = vmatprep.mubr.f32.mxu0 %v1776
        %2334 = vmatmul.mubr.f32.gmra.mxu0 %v1775
        %v2335 = vpop.f32.mrf.mxu0
        %v2336 = vadd.f32 %v2081, %v2335
        %v2337 = vpop.f32.mrf.mxu0
        %2338 = vmatprep.mubr.f32.mxu0 %v1780
        %2339 = vmatmul.mubr.f32.gmra.mxu0 %v1779
        %v2340 = vpop.f32.mrf.mxu0
        %v2341 = vadd.f32 %v2086, %v2340
        %v2342 = vpop.f32.mrf.mxu0
        %2343 = vmatprep.mubr.f32.mxu0 %v1784
        %2344 = vmatmul.mubr.f32.gmra.mxu0 %v1783
        %v2345 = vpop.f32.mrf.mxu0
        %v2346 = vadd.f32 %v2091, %v2345
        %v2347 = vpop.f32.mrf.mxu0
        %2348 = vmatprep.mubr.f32.mxu0 %v1788
        %2349 = vmatmul.mubr.f32.gmra.mxu0 %v1787
        %v2350 = vpop.f32.mrf.mxu0
        %v2351 = vadd.f32 %v2096, %v2350
        %v2352 = vpop.f32.mrf.mxu0
        %2353 = vmatprep.mubr.f32.mxu0 %v1792
        %2354 = vmatmul.mubr.f32.gmra.mxu0 %v1791
        %v2355 = vpop.f32.mrf.mxu0
        %v2356 = vadd.f32 %v2101, %v2355
        %v2357 = vpop.f32.mrf.mxu0
        %2358 = vmatprep.mubr.f32.mxu0 %v1796
        %2359 = vmatmul.mubr.f32.gmra.mxu0 %v1795
        %v2360 = vpop.f32.mrf.mxu0
        %v2361 = vadd.f32 %v2106, %v2360
        %v2362 = vpop.f32.mrf.mxu0
        %2363 = vmatprep.mubr.f32.mxu0 %v1800
        %2364 = vmatmul.mubr.f32.gmra.mxu0 %v1799
        %v2365 = vpop.f32.mrf.mxu0
        %v2366 = vadd.f32 %v2111, %v2365
        %v2367 = vpop.f32.mrf.mxu0
        %2368 = vmatprep.mubr.f32.mxu0 %v1804
        %2369 = vmatmul.mubr.f32.gmra.mxu0 %v1803
        %v2370 = vpop.f32.mrf.mxu0
        %v2371 = vadd.f32 %v2116, %v2370
        %v2372 = vpop.f32.mrf.mxu0
        %2373 = vmatprep.mubr.f32.mxu0 %v1808
        %2374 = vmatmul.mubr.f32.gmra.mxu0 %v1807
        %v2375 = vpop.f32.mrf.mxu0
        %v2376 = vadd.f32 %v2121, %v2375
        %v2377 = vpop.f32.mrf.mxu0
        %2378 = vmatprep.mubr.f32.mxu0 %v1812
        %2379 = vmatmul.mubr.f32.gmra.mxu0 %v1811
        %v2380 = vpop.f32.mrf.mxu0
        %v2381 = vadd.f32 %v2126, %v2380
        %v2382 = vpop.f32.mrf.mxu0
        %2383 = vmatprep.mubr.f32.mxu0 %v1816
        %2384 = vmatmul.mubr.f32.gmra.mxu0 %v1815
        %v2385 = vpop.f32.mrf.mxu0
        %v2386 = vadd.f32 %v2131, %v2385
        %v2387 = vpop.f32.mrf.mxu0
        %2388 = vmatprep.mubr.f32.mxu0 %v1820
        %2389 = vmatmul.mubr.f32.gmra.mxu0 %v1819
        %v2390 = vpop.f32.mrf.mxu0
        %v2391 = vadd.f32 %v2136, %v2390
        %v2392 = vpop.f32.mrf.mxu0
        %2393 = vmatprep.mubr.f32.mxu0 %v1824
        %2394 = vmatmul.mubr.f32.gmra.mxu0 %v1823
        %v2395 = vpop.f32.mrf.mxu0
        %v2396 = vadd.f32 %v2141, %v2395
        %v2397 = vpop.f32.mrf.mxu0
        %2398 = vdwg.mxu0
        %v2399 = vmul.f32 %v2211, 0.25
        %v2400 = vmul.f32 %v2216, 0.25
        %v2401 = vmul.f32 %v2221, 0.25
        %v2402 = vmul.f32 %v2226, 0.25
        %v2403 = vmul.f32 %v2231, 0.25
        %v2404 = vmul.f32 %v2236, 0.25
        %v2405 = vmul.f32 %v2241, 0.25
        %v2406 = vmul.f32 %v2246, 0.25
        %v2407 = vmul.f32 %v2251, 0.25
        %v2408 = vmul.f32 %v2256, 0.25
        %v2409 = vmul.f32 %v2261, 0.25
        %v2410 = vmul.f32 %v2266, 0.25
        %v2411 = vmul.f32 %v2271, 0.25
        %v2412 = vmul.f32 %v2276, 0.25
        %v2413 = vmul.f32 %v2281, 0.25
        %v2414 = vmul.f32 %v2286, 0.25
        %v2415 = vmul.f32 %v2291, 0.25
        %v2416 = vmul.f32 %v2296, 0.25
        %v2417 = vmul.f32 %v2301, 0.25
        %v2418 = vmul.f32 %v2306, 0.25
        %v2419 = vmul.f32 %v2311, 0.25
        %v2420 = vmul.f32 %v2316, 0.25
        %v2421 = vmul.f32 %v2321, 0.25
        %v2422 = vmul.f32 %v2326, 0.25
        %v2423 = vmul.f32 %v2331, 0.25
        %v2424 = vmul.f32 %v2336, 0.25
        %v2425 = vmul.f32 %v2341, 0.25
        %v2426 = vmul.f32 %v2346, 0.25
        %v2427 = vmul.f32 %v2351, 0.25
        %v2428 = vmul.f32 %v2356, 0.25
        %v2429 = vmul.f32 %v2361, 0.25
        %v2430 = vmul.f32 %v2366, 0.25
        %v2431 = vmul.f32 %v2371, 0.25
        %v2432 = vmul.f32 %v2376, 0.25
        %v2433 = vmul.f32 %v2381, 0.25
        %v2434 = vmul.f32 %v2386, 0.25
        %v2435 = vmul.f32 %v2391, 0.25
        %v2436 = vmul.f32 %v2396, 0.25
        %2437 = vst [vmem:[%s191] sm:$0xff] %v2399
        %2438 = vst [vmem:[%s191 + $0x8] sm:$0xff] %v2400
        %2439 = vst [vmem:[%s191 + $0x10] sm:$0xff] %v2401
        %2440 = vst [vmem:[%s191 + $0x18] sm:$0xff] %v2402
        %2441 = vst [vmem:[%s191 + $0x20] sm:$0xff] %v2403
        %2442 = vst [vmem:[%s191 + $0x28] sm:$0xff] %v2404
        %2443 = vst [vmem:[%s191 + $0x30] sm:$0xff] %v2405
        %2444 = vst [vmem:[%s191 + $0x38] sm:$0xff] %v2406
        %2445 = vst [vmem:[%s191 + $0x40] sm:$0xff] %v2407
        %2446 = vst [vmem:[%s191 + $0x48] sm:$0xff] %v2408
        %2447 = vst [vmem:[%s191 + $0x50] sm:$0xff] %v2409
        %2448 = vst [vmem:[%s191 + $0x58] sm:$0xff] %v2410
        %2449 = vst [vmem:[%s191 + $0x60] sm:$0xff] %v2411
        %2450 = vst [vmem:[%s191 + $0x68] sm:$0xff] %v2412
        %2451 = vst [vmem:[%s191 + $0x70] sm:$0xff] %v2413
        %2452 = vst [vmem:[%s191 + $0x78] sm:$0xff] %v2414
        %2453 = vst [vmem:[%s191 + $0x80] sm:$0xff] %v2415
        %2454 = vst [vmem:[%s191 + $0x88] sm:$0xff] %v2416
        %2455 = vst [vmem:[%s191 + $0x90] sm:$0xff] %v2417
        %2456 = vst [vmem:[%s191 + $0x98] sm:$0xff] %v2418
        %2457 = vst [vmem:[%s191 + $0xa0] sm:$0xff] %v2419
        %2458 = vst [vmem:[%s191 + $0xa8] sm:$0xff] %v2420
        %2459 = vst [vmem:[%s191 + $0xb0] sm:$0xff] %v2421
        %2460 = vst [vmem:[%s191 + $0xb8] sm:$0xff] %v2422
        %2461 = vst [vmem:[%s191 + $0xc0] sm:$0xff] %v2423
        %2462 = vst [vmem:[%s191 + $0xc8] sm:$0xff] %v2424
        %2463 = vst [vmem:[%s191 + $0xd0] sm:$0xff] %v2425
        %2464 = vst [vmem:[%s191 + $0xd8] sm:$0xff] %v2426
        %2465 = vst [vmem:[%s191 + $0xe0] sm:$0xff] %v2427
        %2466 = vst [vmem:[%s191 + $0xe8] sm:$0xff] %v2428
        %2467 = vst [vmem:[%s191 + $0xf0] sm:$0xff] %v2429
        %2468 = vst [vmem:[%s191 + $0xf8] sm:$0xff] %v2430
        %2469 = vst [vmem:[%s191 + $0x100] sm:$0xff] %v2431
        %2470 = vst [vmem:[%s191 + $0x108] sm:$0xff] %v2432
        %2471 = vst [vmem:[%s191 + $0x110] sm:$0xff] %v2433
        %2472 = vst [vmem:[%s191 + $0x118] sm:$0xff] %v2434
        %2473 = vst [vmem:[%s191 + $0x120] sm:$0xff] %v2435
        %2474 = vst [vmem:[%s191 + $0x128] sm:$0xff] %v2436
        %s2475 = sand.u32 %s94, 1
        %s2476 = scalar_lea.sflag [#allocation4], %s2475
        %s2477 = sand.u32 %s94, 1
        %s2478 = smul.addr %s2477, 304
        %s2479 = scalar_lea.vmem [#allocation5], %s2478
        // Predicated region
        $region37: #{tpu_custom_call.1} parent=31 // pred_check
          %p2480 = pneg %p104
        $region38: #{tpu_custom_call.1} parent=31 // pred_check_branch
          %2482 = sbr.rel (%p2480) target = $region40
        $region39: #{tpu_custom_call.1} parent=31 // pred_region
          %s2483 = smul.u32 38, %s18
          %s2484 = ssub.s32 75, %s2483
          %p2485 = scmp.lt.s32.totalorder %s2484, 38
          %s2486 = scalar_select %p2485, %s2484, 38
          %s2487 = smul.u32 128, %s2486
          %s2489 = ssub.s32 4864, %s2487
          %2490 = vsyncadd %s2476, %s2489
          %p2491 = scmp.ne.s32.totalorder 0, %s2487
          %s2492 = smul.addr %s2483, 128
          %s2493 = scalar_lea.hbm %s3, %s2492
          %s2494 = smul.u32 8, %s2486
          %s2495 = sshll.u32 %s2479, 4
          %s2496 = int_to_ptr.vmem [resolvable:$true] %s2495
          %s2497 = sshll.u32 %s2494, 4
          %2501 = dma.vmem_to_hbm [thread:$0]  (%p2491), %s2496, %s2497, %s2493, %s2476, 128, 128, 8
        $region40: #{tpu_custom_call.1} parent=31 // pred_fallthru
          _
      $region32: #{tpu_custom_call.1} parent=5 // pred_fallthru
        _
      %p2502 = scmp.le.s32.totalorder 2, %s13
      // Predicated region
      $region41: #{tpu_custom_call.1} parent=5 // pred_check
        %p2503 = pneg %p2502
      $region42: #{tpu_custom_call.1} parent=5 // pred_check_branch
        %2505 = sbr.rel (%p2503) target = $region44
      $region43: #{tpu_custom_call.1} parent=5 // pred_region
        %s2506 = ssub.s32 %s13, 2
        // Predicated region
        $region45: #{tpu_custom_call.1} parent=43 // pred_check
          %p2507 = pneg %p110
        $region46: #{tpu_custom_call.1} parent=43 // pred_check_branch
          %2509 = sbr.rel (%p2507) target = $region48
        $region47: #{tpu_custom_call.1} parent=43 // pred_region
          %s2510 = sand.u32 %s95, 1
          %s2511 = scalar_lea.sflag [#allocation4], %s2510
          %s2512 = sand.u32 %s95, 1
          %s2513 = smul.addr %s2512, 304
          %s2514 = scalar_lea.vmem [#allocation5], %s2513
          %2515 = dma.done %s2511, 4864
        $region48: #{tpu_custom_call.1} parent=43 // pred_fallthru
          _
      $region44: #{tpu_custom_call.1} parent=5 // pred_fallthru
        _
    $region6: #{tpu_custom_call.1} parent=1 // loop_footer
      %s17 = sadd.s32 1, %s13
    $region7: #{tpu_custom_call.1} parent=1 // loop_footer_branch
      %12 = sbr.rel target = $region3
    $region8: #{tpu_custom_call.1} parent=1 // loop_exit
      _
    %2516 = vsyncpa [#allocation3], 1
    %s2517 = scalar_lea.sflag [#allocation3], 1
    %2518 = vsyncpa %s2517, 1
    %2519 = vsyncpa [#allocation4], 1
    %s2520 = scalar_lea.sflag [#allocation4], 1
    %2521 = vsyncpa %s2520, 1

</llo_original>
